<compile_context>
chip_gen: v7x
topology: tpu7x:2x2x1
jax: 0.10.0
libtpu: 0.0.40
codegen_flags: <defaults>
</compile_context>

<pallas_src>
import functools

import jax
import jax.numpy as jnp
from jax import lax
from jax.experimental import pallas as pl
from jax.experimental.pallas import tpu as pltpu


# ----------------------------------------------------------------------------
# Fused bidirectional LSTM layer kernel (whole recurrence, T chunked over the grid)
# ----------------------------------------------------------------------------
def _bilstm_kernel(*args, n_parts, hidden, t_chunk, seq_pad, unroll):
    H = hidden
    Tc = t_chunk

    idx = 0
    xf = args[idx:idx + n_parts]; idx += n_parts          # fwd-direction input chunks
    xb = args[idx:idx + n_parts]; idx += n_parts          # bwd-direction input chunks (block nc-1-i)
    wif = args[idx:idx + n_parts]; idx += n_parts         # (Dp, 4H) per part, fwd
    wib = args[idx:idx + n_parts]; idx += n_parts         # (Dp, 4H) per part, bwd
    whh_f, whh_b, bias_f, bias_b = args[idx:idx + 4]; idx += 4
    out_f, out_b = args[idx:idx + 2]; idx += 2
    gf_scr, gb_scr, h_scr, c_scr = args[idx:idx + 4]

    Bb = out_f.shape[1]
    i_chunk = pl.program_id(1)

    # h/c scratch persists across the time grid axis; re-init at the start of each batch block.
    @pl.when(i_chunk == 0)
    def _init():
        h_scr[...] = jnp.zeros_like(h_scr)
        c_scr[...] = jnp.zeros_like(c_scr)

    # ---- Hoisted input projection for this chunk (both directions): one GEMM per input
    # part per direction, bias folded in, staged in VMEM scratch (gate order [i f o g]).
    def _project(x_refs, w_refs, b_ref):
        acc = None
        for p in range(n_parts):
            xp = x_refs[p][...].reshape(Tc * Bb, x_refs[p].shape[-1])
            term = jnp.dot(xp, w_refs[p][...], preferred_element_type=jnp.float32)
            acc = term if acc is None else acc + term
        return (acc + b_ref[...]).reshape(Tc, Bb, 4 * H)

    gf_scr[...] = _project(xf, wif, bias_f).astype(gf_scr.dtype)
    gb_scr[...] = _project(xb, wib, bias_b).astype(gb_scr.dtype)

    state_dtype = h_scr.dtype

    # ---- Serial recurrence: two (Bb, H) @ (H, 4H) matmuls + elementwise per step.
    # No concatenates, no gate blend; one 3H sigmoid + one H tanh per direction.
    def step(s, carry):
        h_f, h_b, c_f, c_b = carry
        rs = Tc - 1 - s
        rec_f = jnp.dot(h_f, whh_f[...], preferred_element_type=jnp.float32)
        rec_b = jnp.dot(h_b, whh_b[...], preferred_element_type=jnp.float32)
        gate_f = gf_scr[s] + rec_f                    # (Bb, 4H), [i f o g]
        gate_b = gb_scr[rs] + rec_b
        sig_f = jax.nn.sigmoid(gate_f[:, :3 * H])
        g_f = jnp.tanh(gate_f[:, 3 * H:])
        sig_b = jax.nn.sigmoid(gate_b[:, :3 * H])
        g_b = jnp.tanh(gate_b[:, 3 * H:])
        c_f = sig_f[:, H:2 * H] * c_f + sig_f[:, :H] * g_f
        c_b = sig_b[:, H:2 * H] * c_b + sig_b[:, :H] * g_b
        h_f = sig_f[:, 2 * H:] * jnp.tanh(c_f)
        h_b = sig_b[:, 2 * H:] * jnp.tanh(c_b)
        if seq_pad > 0:
            # Backward direction sweeps the (zero/garbage) padded tail first; keep its
            # state at zero until the first real timestep so real outputs are unaffected.
            live = ((i_chunk * Tc + s) >= seq_pad).astype(jnp.float32)
            c_b = c_b * live
            h_b = h_b * live
        h_f = h_f.astype(state_dtype)
        h_b = h_b.astype(state_dtype)
        out_f[s] = h_f.astype(out_f.dtype)            # fwd half at time i*Tc + s
        out_b[rs] = h_b.astype(out_b.dtype)           # bwd half, already time-unreversed
        return h_f, h_b, c_f, c_b

    carry0 = (h_scr[0], h_scr[1], c_scr[0], c_scr[1])
    h_f, h_b, c_f, c_b = lax.fori_loop(0, Tc, step, carry0, unroll=unroll)
    h_scr[0] = h_f
    h_scr[1] = h_b
    c_scr[0] = c_f
    c_scr[1] = c_b


# ----------------------------------------------------------------------------
# Wrapper: weight prep + pallas_call per layer
# ----------------------------------------------------------------------------
def _reorder_gates(w, hidden):
    """Permute last-axis gate blocks from PyTorch order [i f g o] to [i f o g]."""
    H = hidden
    return jnp.concatenate(
        [w[..., :2 * H], w[..., 3 * H:4 * H], w[..., 2 * H:3 * H]], axis=-1)


def birnn_layer_fused(x_parts, params, hidden, *, t_chunk, seq_pad, num_batch_blocks,
                      compute_dtype, vmem_limit_bytes):
    """One bidirectional LSTM layer.

    x_parts: tuple of (T_pad, Bp, Dp) arrays (1 part for layer 0; the previous layer's
    fwd/bwd halves for deeper layers).  Returns (out_f, out_b), each (T_pad, Bp, H).
    """
    H = hidden
    T_pad, Bp, _ = x_parts[0].shape
    part_dims = tuple(int(x.shape[-1]) for x in x_parts)
    n_parts = len(x_parts)
    Tc = t_chunk
    nc = T_pad // Tc
    nb = num_batch_blocks
    Bb = Bp // nb
    cdt = compute_dtype

    # Weight prep (once per layer call; constant-foldable).  Gate columns reordered to
    # [i f o g]; W_ih rows split per input part so fwd/bwd halves feed in separately.
    def prep_ih(w):
        w_t = _reorder_gates(jnp.transpose(w), H).astype(cdt)     # (D, 4H)
        out, off = [], 0
        for d in part_dims:
            out.append(w_t[off:off + d])
            off += d
        return out

    wif_parts = prep_ih(params["w_ih_f"])
    wib_parts = prep_ih(params["w_ih_b"])
    whh_f = _reorder_gates(jnp.transpose(params["w_hh_f"]), H).astype(cdt)   # (H, 4H)
    whh_b = _reorder_gates(jnp.transpose(params["w_hh_b"]), H).astype(cdt)
    bias_f = _reorder_gates(params["b_f"].reshape(1, 4 * H), H).astype(jnp.float32)
    bias_b = _reorder_gates(params["b_b"].reshape(1, 4 * H), H).astype(jnp.float32)

    x_in = [x.astype(cdt) for x in x_parts]

    in_specs = []
    for d in part_dims:                                   # forward chunk i
        in_specs.append(pl.BlockSpec((Tc, Bb, d), lambda b, i: (i, b, 0)))
    for d in part_dims:                                   # backward chunk nc-1-i
        in_specs.append(pl.BlockSpec((Tc, Bb, d), lambda b, i, _n=nc: (_n - 1 - i, b, 0)))
    for d in part_dims:
        in_specs.append(pl.BlockSpec((d, 4 * H), lambda b, i: (0, 0)))
    for d in part_dims:
        in_specs.append(pl.BlockSpec((d, 4 * H), lambda b, i: (0, 0)))
    in_specs += [
        pl.BlockSpec((H, 4 * H), lambda b, i: (0, 0)),
        pl.BlockSpec((H, 4 * H), lambda b, i: (0, 0)),
        pl.BlockSpec((1, 4 * H), lambda b, i: (0, 0)),
        pl.BlockSpec((1, 4 * H), lambda b, i: (0, 0)),
    ]
    out_specs = [
        pl.BlockSpec((Tc, Bb, H), lambda b, i: (i, b, 0)),                       # fwd half
        pl.BlockSpec((Tc, Bb, H), lambda b, i, _n=nc: (_n - 1 - i, b, 0)),       # bwd half
    ]
    out_shape = (jax.ShapeDtypeStruct((T_pad, Bp, H), cdt),
                 jax.ShapeDtypeStruct((T_pad, Bp, H), cdt))

    kernel = functools.partial(
        _bilstm_kernel, n_parts=n_parts, hidden=H, t_chunk=Tc,
        seq_pad=seq_pad, unroll=min(Tc, 8))

    out_f, out_b = pl.pallas_call(
        kernel,
        out_shape=out_shape,
        grid_spec=pltpu.PrefetchScalarGridSpec(
            num_scalar_prefetch=0,
            grid=(nb, nc),
            in_specs=in_specs,
            out_specs=out_specs,
            scratch_shapes=[
                pltpu.VMEM((Tc, Bb, 4 * H), cdt),          # pre-projected gates, fwd
                pltpu.VMEM((Tc, Bb, 4 * H), cdt),          # pre-projected gates, bwd
                pltpu.VMEM((2, Bb, H), cdt),               # h state carry (fwd, bwd)
                pltpu.VMEM((2, Bb, H), jnp.float32),       # c state carry (fwd, bwd)
            ],
        ),
        compiler_params=pltpu.CompilerParams(
            dimension_semantics=("parallel", "arbitrary"),
            vmem_limit_bytes=vmem_limit_bytes,
        ),
    )(*x_in, *x_in, *wif_parts, *wib_parts, whh_f, whh_b, bias_f, bias_b)

    return out_f, out_b


def _choose_t_chunk(T, b_block, hidden, feat_sum, itemsize, budget_bytes):
    """Largest Tc whose gate scratch + double-buffered I/O chunks fit the budget."""
    per_t = b_block * (2 * 4 * hidden * itemsize          # gf + gb scratch rows
                       + 2 * 2 * feat_sum * itemsize      # fwd + bwd input chunks, 2-buffered
                       + 2 * 2 * hidden * itemsize)       # two output halves, 2-buffered
    return int(max(1, min(T, budget_bytes // max(1, per_t))))


# ----------------------------------------------------------------------------
# StackedBRNN forward (unpadded path; eval / dropout inactive; concat_layers=False)
# ----------------------------------------------------------------------------
def stacked_brnn_forward(x, x_mask, layer_params, hidden, *, t_chunk=None,
                         compute_dtype=jnp.float32, num_batch_blocks=1):
    # forward() dispatch: x_mask.sum() == 0 -> _forward_unpadded.
    # TODO(synk): _forward_padded (pack_padded_sequence path) not implemented; as written
    # in the reference module it is unreachable without error (pad_packed_sequence(0)).
    del x_mask
    B, T, Din = x.shape
    H = hidden
    cdt = compute_dtype

    nb = max(1, int(num_batch_blocks))                    # set 2 on v7x (2 TensorCores)
    b_pad = -(-B // (8 * nb)) * (8 * nb)                  # sublane-fill every batch block
    Bb = b_pad // nb

    # VMEM budget: query real capacity when possible, raise the scoped limit above default.
    try:
        vmem_cap = int(pltpu.get_tpu_info().vmem_capacity_bytes)
    except Exception:
        vmem_cap = 64 << 20
    vmem_limit = min((vmem_cap * 3) // 4, 96 << 20)
    budget = vmem_limit // 2

    feat_sum = max(Din, 2 * H)
    itemsize = jnp.dtype(cdt).itemsize
    if t_chunk is not None:
        Tc = int(max(1, min(t_chunk, T)))
    else:
        Tc = _choose_t_chunk(T, Bb, H, feat_sum, itemsize, budget)
    nc = -(-T // Tc)
    T_pad = nc * Tc
    seq_pad = T_pad - T

    out0 = jnp.transpose(x, (1, 0, 2)).astype(cdt)        # (T, B, D), like x.transpose(0, 1)
    out0 = jnp.pad(out0, ((0, seq_pad), (0, b_pad - B), (0, 0)))

    parts = (out0,)
    for p in layer_params:
        parts = birnn_layer_fused(parts, p, hidden, t_chunk=Tc, seq_pad=seq_pad,
                                  num_batch_blocks=nb, compute_dtype=cdt,
                                  vmem_limit_bytes=vmem_limit)

    # _forward_unpadded returns outputs[-1] with NO transpose back -> (T, B, 2H).
    out = jnp.concatenate(parts, axis=-1)
    return out[:T, :B, :].astype(jnp.float32)


# ----------------------------------------------------------------------------
# Pure-JAX reference (lax.scan) for correctness checking
# ----------------------------------------------------------------------------
def _lstm_ref_dir(x_tm, w_ih, w_hh, bias, hidden):
    B = x_tm.shape[1]

    def step(carry, x_t):
        h, c = carry
        gates = x_t @ w_ih.T + h @ w_hh.T + bias
        i, f, g, o = jnp.split(gates, 4, axis=-1)
        i, f, o = jax.nn.sigmoid(i), jax.nn.sigmoid(f), jax.nn.sigmoid(o)
        g = jnp.tanh(g)
        c = f * c + i * g
        h = o * jnp.tanh(c)
        return (h, c), h

    init = (jnp.zeros((B, hidden), jnp.float32), jnp.zeros((B, hidden), jnp.float32))
    _, hs = lax.scan(step, init, x_tm)
    return hs


def _ref_forward(x, layer_params, hidden):
    out = jnp.transpose(x, (1, 0, 2))
    for p in layer_params:
        h_f = _lstm_ref_dir(out, p["w_ih_f"], p["w_hh_f"], p["b_f"], hidden)
        h_b = jnp.flip(
            _lstm_ref_dir(jnp.flip(out, axis=0), p["w_ih_b"], p["w_hh_b"], p["b_b"], hidden),
            axis=0,
        )
        out = jnp.concatenate([h_f, h_b], axis=-1)
    return out


# ----------------------------------------------------------------------------
# Deterministic parameter init (PyTorch LSTM default: U(-1/sqrt(H), 1/sqrt(H)))
# ----------------------------------------------------------------------------
def init_params(key, input_size, hidden, num_layers):
    k = 1.0 / jnp.sqrt(jnp.float32(hidden))
    params = []
    for layer in range(num_layers):
        d_in = input_size if layer == 0 else 2 * hidden
        p = {}
        for direction in ("f", "b"):
            key, k1, k2, k3, k4 = jax.random.split(key, 5)
            p[f"w_ih_{direction}"] = jax.random.uniform(k1, (4 * hidden, d_in), jnp.float32, -k, k)
            p[f"w_hh_{direction}"] = jax.random.uniform(k2, (4 * hidden, hidden), jnp.float32, -k, k)
            # bias_ih + bias_hh folded into one vector
            p[f"b_{direction}"] = (
                jax.random.uniform(k3, (4 * hidden,), jnp.float32, -k, k)
                + jax.random.uniform(k4, (4 * hidden,), jnp.float32, -k, k)
            )
        params.append(p)
    return params


if __name__ == "__main__":
    batch, seq, input_size, hidden, num_layers = 2, 8, 16, 32, 2

    key = jax.random.PRNGKey(0)
    key, kx = jax.random.split(key)
    x = jax.random.normal(kx, (batch, seq, input_size), jnp.float32)
    x_mask = jnp.zeros((batch, seq), jnp.int32)           # mask.sum() == 0 -> unpadded path

    layer_params = init_params(key, input_size, hidden, num_layers)
    ref = jax.block_until_ready(_ref_forward(x, layer_params, hidden))

    # f32 with t_chunk=3: T=8 is NOT divisible -> exercises time padding (T_pad=9), the
    # backward-state masking, cross-chunk h/c carry and the reversed bwd output index map.
    out = jax.block_until_ready(
        stacked_brnn_forward(x, x_mask, layer_params, hidden, t_chunk=3))
    assert out.shape == (seq, batch, 2 * hidden), out.shape
    assert jnp.allclose(out, ref, atol=1e-4, rtol=1e-4), float(jnp.max(jnp.abs(out - ref)))

    # f32, two batch blocks on the "parallel" grid axis (v7x megacore lever), auto t_chunk.
    b2 = 16
    key, kx2 = jax.random.split(key)
    x2 = jax.random.normal(kx2, (b2, seq, input_size), jnp.float32)
    mask2 = jnp.zeros((b2, seq), jnp.int32)
    ref2 = jax.block_until_ready(_ref_forward(x2, layer_params, hidden))
    out2 = jax.block_until_ready(
        stacked_brnn_forward(x2, mask2, layer_params, hidden, num_batch_blocks=2))
    assert out2.shape == (seq, b2, 2 * hidden), out2.shape
    assert jnp.allclose(out2, ref2, atol=1e-4, rtol=1e-4), float(jnp.max(jnp.abs(out2 - ref2)))

    # bf16 MXU operands + bf16 gate scratch / h state / inter-layer activations,
    # f32 accumulation and cell state; looser tolerance.
    out_bf16 = jax.block_until_ready(
        stacked_brnn_forward(x, x_mask, layer_params, hidden, compute_dtype=jnp.bfloat16))
    assert out_bf16.shape == (seq, batch, 2 * hidden), out_bf16.shape
    assert jnp.allclose(out_bf16, ref, atol=7e-2, rtol=7e-2), \
        float(jnp.max(jnp.abs(out_bf16 - ref)))

    print("KERNEL_OK")
</pallas_src>

<mosaic_0001>
module attributes {stable_mosaic.version = 11 : i64} {
  func.func @_bilstm_kernel(%arg0: i32, %arg1: i32, %arg2: memref<3x8x16xf32, #tpu.memory_space<vmem>>, %arg3: memref<3x8x16xf32, #tpu.memory_space<vmem>>, %arg4: memref<16x128xf32, #tpu.memory_space<vmem>>, %arg5: memref<16x128xf32, #tpu.memory_space<vmem>>, %arg6: memref<32x128xf32, #tpu.memory_space<vmem>>, %arg7: memref<32x128xf32, #tpu.memory_space<vmem>>, %arg8: memref<1x128xf32, #tpu.memory_space<vmem>>, %arg9: memref<1x128xf32, #tpu.memory_space<vmem>>, %arg10: memref<3x8x32xf32, #tpu.memory_space<vmem>>, %arg11: memref<3x8x32xf32, #tpu.memory_space<vmem>>, %arg12: memref<3x8x128xf32, #tpu.memory_space<vmem>>, %arg13: memref<3x8x128xf32, #tpu.memory_space<vmem>>, %arg14: memref<2x8x32xf32, #tpu.memory_space<vmem>>, %arg15: memref<2x8x32xf32, #tpu.memory_space<vmem>>) attributes {dimension_semantics = [#tpu.dimension_semantics<parallel>, #tpu.dimension_semantics<arbitrary>], iteration_bounds = array<i64: 1, 3>, scalar_prefetch = 0 : i64, scratch_operands = 4 : i64, tpu.core_type = #tpu.core_type<tc>, window_params = [{transform_indices = @transform_0, window_bounds = array<i64: 3, 8, 16>}, {transform_indices = @transform_1, window_bounds = array<i64: 3, 8, 16>}, {pipeline_mode = #tpu.pipeline_mode<synchronous>, transform_indices = @transform_2, window_bounds = array<i64: 16, 128>}, {pipeline_mode = #tpu.pipeline_mode<synchronous>, transform_indices = @transform_3, window_bounds = array<i64: 16, 128>}, {pipeline_mode = #tpu.pipeline_mode<synchronous>, transform_indices = @transform_4, window_bounds = array<i64: 32, 128>}, {pipeline_mode = #tpu.pipeline_mode<synchronous>, transform_indices = @transform_5, window_bounds = array<i64: 32, 128>}, {pipeline_mode = #tpu.pipeline_mode<synchronous>, transform_indices = @transform_6, window_bounds = array<i64: 1, 128>}, {pipeline_mode = #tpu.pipeline_mode<synchronous>, transform_indices = @transform_7, window_bounds = array<i64: 1, 128>}, {transform_indices = @transform_8, window_bounds = array<i64: 3, 8, 32>}, {transform_indices = @transform_9, window_bounds = array<i64: 3, 8, 32>}]} {
    %c0_i32 = arith.constant 0 : i32
    %0 = arith.cmpi eq, %arg1, %c0_i32 : i32
    %1 = arith.extui %0 : i1 to i32
    %c0_i32_0 = arith.constant 0 : i32
    %2 = arith.cmpi ne, %1, %c0_i32_0 : i32
    scf.if %2 {
      %cst_102 = arith.constant 0.000000e+00 : f32
      %227 = vector.broadcast %cst_102 : f32 to vector<2x8x32xf32>
      %c0_103 = arith.constant 0 : index
      %c0_104 = arith.constant 0 : index
      %c0_105 = arith.constant 0 : index
      %228 = vector.load %arg14[%c0_103, %c0_104, %c0_105] : memref<2x8x32xf32, #tpu.memory_space<vmem>>, vector<2x8x32xf32>
      tpu.vector_store %arg14[%c0_103, %c0_104, %c0_105], %227 {strides = array<i32>} : memref<2x8x32xf32, #tpu.memory_space<vmem>>, vector<2x8x32xf32>,
      %cst_106 = arith.constant 0.000000e+00 : f32
      %229 = vector.broadcast %cst_106 : f32 to vector<2x8x32xf32>
      %c0_107 = arith.constant 0 : index
      %c0_108 = arith.constant 0 : index
      %c0_109 = arith.constant 0 : index
      %230 = vector.load %arg15[%c0_107, %c0_108, %c0_109] : memref<2x8x32xf32, #tpu.memory_space<vmem>>, vector<2x8x32xf32>
      tpu.vector_store %arg15[%c0_107, %c0_108, %c0_109], %229 {strides = array<i32>} : memref<2x8x32xf32, #tpu.memory_space<vmem>>, vector<2x8x32xf32>,
    } else {
    }
    %c0 = arith.constant 0 : index
    %c0_1 = arith.constant 0 : index
    %c0_2 = arith.constant 0 : index
    %3 = vector.load %arg2[%c0, %c0_1, %c0_2] : memref<3x8x16xf32, #tpu.memory_space<vmem>>, vector<3x8x16xf32>
    %4 = vector.shape_cast %3 : vector<3x8x16xf32> to vector<24x16xf32>
    %c0_3 = arith.constant 0 : index
    %c0_4 = arith.constant 0 : index
    %5 = vector.load %arg4[%c0_3, %c0_4] : memref<16x128xf32, #tpu.memory_space<vmem>>, vector<16x128xf32>
    %cst = arith.constant dense<0.000000e+00> : vector<24x128xf32>
    %6 = tpu.matmul %4, %5, %cst {dimension_numbers = #tpu.dot_dimension_numbers<[1], [0], [0], [1], [0, 0, 1, 1], [], []>} : vector<24x16xf32>, vector<16x128xf32>, vector<24x128xf32> -> vector<24x128xf32>
    %c0_5 = arith.constant 0 : index
    %c0_6 = arith.constant 0 : index
    %7 = vector.load %arg8[%c0_5, %c0_6] : memref<1x128xf32, #tpu.memory_space<vmem>>, vector<1x128xf32>
    %8 = vector.broadcast %7 : vector<1x128xf32> to vector<24x128xf32>
    %9 = arith.addf %6, %8 : vector<24x128xf32>
    %10 = vector.shape_cast %9 : vector<24x128xf32> to vector<3x8x128xf32>
    %c0_7 = arith.constant 0 : index
    %c0_8 = arith.constant 0 : index
    %c0_9 = arith.constant 0 : index
    %11 = vector.load %arg12[%c0_7, %c0_8, %c0_9] : memref<3x8x128xf32, #tpu.memory_space<vmem>>, vector<3x8x128xf32>
    tpu.vector_store %arg12[%c0_7, %c0_8, %c0_9], %10 {strides = array<i32>} : memref<3x8x128xf32, #tpu.memory_space<vmem>>, vector<3x8x128xf32>,
    %c0_10 = arith.constant 0 : index
    %c0_11 = arith.constant 0 : index
    %c0_12 = arith.constant 0 : index
    %12 = vector.load %arg3[%c0_10, %c0_11, %c0_12] : memref<3x8x16xf32, #tpu.memory_space<vmem>>, vector<3x8x16xf32>
    %13 = vector.shape_cast %12 : vector<3x8x16xf32> to vector<24x16xf32>
    %c0_13 = arith.constant 0 : index
    %c0_14 = arith.constant 0 : index
    %14 = vector.load %arg5[%c0_13, %c0_14] : memref<16x128xf32, #tpu.memory_space<vmem>>, vector<16x128xf32>
    %cst_15 = arith.constant dense<0.000000e+00> : vector<24x128xf32>
    %15 = tpu.matmul %13, %14, %cst_15 {dimension_numbers = #tpu.dot_dimension_numbers<[1], [0], [0], [1], [0, 0, 1, 1], [], []>} : vector<24x16xf32>, vector<16x128xf32>, vector<24x128xf32> -> vector<24x128xf32>
    %c0_16 = arith.constant 0 : index
    %c0_17 = arith.constant 0 : index
    %16 = vector.load %arg9[%c0_16, %c0_17] : memref<1x128xf32, #tpu.memory_space<vmem>>, vector<1x128xf32>
    %17 = vector.broadcast %16 : vector<1x128xf32> to vector<24x128xf32>
    %18 = arith.addf %15, %17 : vector<24x128xf32>
    %19 = vector.shape_cast %18 : vector<24x128xf32> to vector<3x8x128xf32>
    %c0_18 = arith.constant 0 : index
    %c0_19 = arith.constant 0 : index
    %c0_20 = arith.constant 0 : index
    %20 = vector.load %arg13[%c0_18, %c0_19, %c0_20] : memref<3x8x128xf32, #tpu.memory_space<vmem>>, vector<3x8x128xf32>
    tpu.vector_store %arg13[%c0_18, %c0_19, %c0_20], %19 {strides = array<i32>} : memref<3x8x128xf32, #tpu.memory_space<vmem>>, vector<3x8x128xf32>,
    %c0_21 = arith.constant 0 : index
    %c0_22 = arith.constant 0 : index
    %c0_23 = arith.constant 0 : index
    %21 = vector.load %arg14[%c0_21, %c0_22, %c0_23] : memref<2x8x32xf32, #tpu.memory_space<vmem>>, vector<1x8x32xf32>
    %22 = vector.shape_cast %21 : vector<1x8x32xf32> to vector<8x32xf32>
    %c1 = arith.constant 1 : index
    %c0_24 = arith.constant 0 : index
    %c0_25 = arith.constant 0 : index
    %23 = vector.load %arg14[%c1, %c0_24, %c0_25] : memref<2x8x32xf32, #tpu.memory_space<vmem>>, vector<1x8x32xf32>
    %24 = vector.shape_cast %23 : vector<1x8x32xf32> to vector<8x32xf32>
    %c0_26 = arith.constant 0 : index
    %c0_27 = arith.constant 0 : index
    %c0_28 = arith.constant 0 : index
    %25 = vector.load %arg15[%c0_26, %c0_27, %c0_28] : memref<2x8x32xf32, #tpu.memory_space<vmem>>, vector<1x8x32xf32>
    %26 = vector.shape_cast %25 : vector<1x8x32xf32> to vector<8x32xf32>
    %c1_29 = arith.constant 1 : index
    %c0_30 = arith.constant 0 : index
    %c0_31 = arith.constant 0 : index
    %27 = vector.load %arg15[%c1_29, %c0_30, %c0_31] : memref<2x8x32xf32, #tpu.memory_space<vmem>>, vector<1x8x32xf32>
    %28 = vector.shape_cast %27 : vector<1x8x32xf32> to vector<8x32xf32>
    %c0_i32_32 = arith.constant 0 : i32
    %c2_i32 = arith.constant 2 : i32
    %29 = arith.subi %c2_i32, %c0_i32_32 : i32
    %c0_33 = arith.constant 0 : index
    %c0_34 = arith.constant 0 : index
    %30 = vector.load %arg6[%c0_33, %c0_34] : memref<32x128xf32, #tpu.memory_space<vmem>>, vector<32x128xf32>
    %cst_35 = arith.constant dense<0.000000e+00> : vector<8x128xf32>
    %31 = tpu.matmul %22, %30, %cst_35 {dimension_numbers = #tpu.dot_dimension_numbers<[1], [0], [0], [1], [0, 0, 1, 1], [], []>} : vector<8x32xf32>, vector<32x128xf32>, vector<8x128xf32> -> vector<8x128xf32>
    %c0_36 = arith.constant 0 : index
    %c0_37 = arith.constant 0 : index
    %32 = vector.load %arg7[%c0_36, %c0_37] : memref<32x128xf32, #tpu.memory_space<vmem>>, vector<32x128xf32>
    %cst_38 = arith.constant dense<0.000000e+00> : vector<8x128xf32>
    %33 = tpu.matmul %24, %32, %cst_38 {dimension_numbers = #tpu.dot_dimension_numbers<[1], [0], [0], [1], [0, 0, 1, 1], [], []>} : vector<8x32xf32>, vector<32x128xf32>, vector<8x128xf32> -> vector<8x128xf32>
    %34 = arith.index_cast %c0_i32_32 : i32 to index
    %c0_39 = arith.constant 0 : index
    %c0_40 = arith.constant 0 : index
    %35 = vector.load %arg12[%34, %c0_39, %c0_40] : memref<3x8x128xf32, #tpu.memory_space<vmem>>, vector<1x8x128xf32>
    %36 = vector.shape_cast %35 : vector<1x8x128xf32> to vector<8x128xf32>
    %37 = arith.addf %36, %31 : vector<8x128xf32>
    %38 = arith.index_cast %29 : i32 to index
    %c0_41 = arith.constant 0 : index
    %c0_42 = arith.constant 0 : index
    %39 = vector.load %arg13[%38, %c0_41, %c0_42] : memref<3x8x128xf32, #tpu.memory_space<vmem>>, vector<1x8x128xf32>
    %40 = vector.shape_cast %39 : vector<1x8x128xf32> to vector<8x128xf32>
    %41 = arith.addf %40, %33 : vector<8x128xf32>
    %42 = vector.extract_strided_slice %37 {offsets = [0, 0], sizes = [8, 96], strides = [1, 1]} : vector<8x128xf32> to vector<8x96xf32>
    %43 = arith.negf %42 : vector<8x96xf32>
    %44 = math.exp %43 : vector<8x96xf32>
    %cst_43 = arith.constant 1.000000e+00 : f32
    %45 = vector.broadcast %cst_43 : f32 to vector<8x96xf32>
    %46 = arith.addf %45, %44 : vector<8x96xf32>
    %47 = arith.divf %45, %46 : vector<8x96xf32>
    %48 = vector.extract_strided_slice %37 {offsets = [0, 96], sizes = [8, 32], strides = [1, 1]} : vector<8x128xf32> to vector<8x32xf32>
    %49 = math.tanh %48 : vector<8x32xf32>
    %50 = vector.extract_strided_slice %41 {offsets = [0, 0], sizes = [8, 96], strides = [1, 1]} : vector<8x128xf32> to vector<8x96xf32>
    %51 = arith.negf %50 : vector<8x96xf32>
    %52 = math.exp %51 : vector<8x96xf32>
    %cst_44 = arith.constant 1.000000e+00 : f32
    %53 = vector.broadcast %cst_44 : f32 to vector<8x96xf32>
    %54 = arith.addf %53, %52 : vector<8x96xf32>
    %55 = arith.divf %53, %54 : vector<8x96xf32>
    %56 = vector.extract_strided_slice %41 {offsets = [0, 96], sizes = [8, 32], strides = [1, 1]} : vector<8x128xf32> to vector<8x32xf32>
    %57 = math.tanh %56 : vector<8x32xf32>
    %58 = vector.extract_strided_slice %47 {offsets = [0, 32], sizes = [8, 32], strides = [1, 1]} : vector<8x96xf32> to vector<8x32xf32>
    %59 = arith.mulf %58, %26 : vector<8x32xf32>
    %60 = vector.extract_strided_slice %47 {offsets = [0, 0], sizes = [8, 32], strides = [1, 1]} : vector<8x96xf32> to vector<8x32xf32>
    %61 = arith.mulf %60, %49 : vector<8x32xf32>
    %62 = arith.addf %59, %61 : vector<8x32xf32>
    %63 = vector.extract_strided_slice %55 {offsets = [0, 32], sizes = [8, 32], strides = [1, 1]} : vector<8x96xf32> to vector<8x32xf32>
    %64 = arith.mulf %63, %28 : vector<8x32xf32>
    %65 = vector.extract_strided_slice %55 {offsets = [0, 0], sizes = [8, 32], strides = [1, 1]} : vector<8x96xf32> to vector<8x32xf32>
    %66 = arith.mulf %65, %57 : vector<8x32xf32>
    %67 = arith.addf %64, %66 : vector<8x32xf32>
    %68 = vector.extract_strided_slice %47 {offsets = [0, 64], sizes = [8, 32], strides = [1, 1]} : vector<8x96xf32> to vector<8x32xf32>
    %69 = math.tanh %62 : vector<8x32xf32>
    %70 = arith.mulf %68, %69 : vector<8x32xf32>
    %71 = vector.extract_strided_slice %55 {offsets = [0, 64], sizes = [8, 32], strides = [1, 1]} : vector<8x96xf32> to vector<8x32xf32>
    %72 = math.tanh %67 : vector<8x32xf32>
    %73 = arith.mulf %71, %72 : vector<8x32xf32>
    %c3_i32 = arith.constant 3 : i32
    %74 = arith.muli %arg1, %c3_i32 : i32
    %75 = arith.addi %74, %c0_i32_32 : i32
    %c1_i32 = arith.constant 1 : i32
    %76 = arith.cmpi sge, %75, %c1_i32 : i32
    %77 = arith.extui %76 : i1 to i32
    %78 = arith.sitofp %77 : i32 to f32
    %79 = vector.broadcast %78 : f32 to vector<8x32xf32>
    %80 = arith.mulf %67, %79 : vector<8x32xf32>
    %81 = vector.broadcast %78 : f32 to vector<8x32xf32>
    %82 = arith.mulf %73, %81 : vector<8x32xf32>
    %83 = arith.index_cast %c0_i32_32 : i32 to index
    %c0_45 = arith.constant 0 : index
    %c0_46 = arith.constant 0 : index
    %84 = vector.load %arg10[%83, %c0_45, %c0_46] : memref<3x8x32xf32, #tpu.memory_space<vmem>>, vector<1x8x32xf32>
    %85 = vector.shape_cast %84 : vector<1x8x32xf32> to vector<8x32xf32>
    %86 = vector.shape_cast %70 : vector<8x32xf32> to vector<1x8x32xf32>
    tpu.vector_store %arg10[%83, %c0_45, %c0_46], %86 {strides = array<i32>} : memref<3x8x32xf32, #tpu.memory_space<vmem>>, vector<1x8x32xf32>,
    %87 = arith.index_cast %29 : i32 to index
    %c0_47 = arith.constant 0 : index
    %c0_48 = arith.constant 0 : index
    %88 = vector.load %arg11[%87, %c0_47, %c0_48] : memref<3x8x32xf32, #tpu.memory_space<vmem>>, vector<1x8x32xf32>
    %89 = vector.shape_cast %88 : vector<1x8x32xf32> to vector<8x32xf32>
    %90 = vector.shape_cast %82 : vector<8x32xf32> to vector<1x8x32xf32>
    tpu.vector_store %arg11[%87, %c0_47, %c0_48], %90 {strides = array<i32>} : memref<3x8x32xf32, #tpu.memory_space<vmem>>, vector<1x8x32xf32>,
    %c1_i32_49 = arith.constant 1 : i32
    %c2_i32_50 = arith.constant 2 : i32
    %91 = arith.subi %c2_i32_50, %c1_i32_49 : i32
    %c0_51 = arith.constant 0 : index
    %c0_52 = arith.constant 0 : index
    %92 = vector.load %arg6[%c0_51, %c0_52] : memref<32x128xf32, #tpu.memory_space<vmem>>, vector<32x128xf32>
    %cst_53 = arith.constant dense<0.000000e+00> : vector<8x128xf32>
    %93 = tpu.matmul %70, %92, %cst_53 {dimension_numbers = #tpu.dot_dimension_numbers<[1], [0], [0], [1], [0, 0, 1, 1], [], []>} : vector<8x32xf32>, vector<32x128xf32>, vector<8x128xf32> -> vector<8x128xf32>
    %c0_54 = arith.constant 0 : index
    %c0_55 = arith.constant 0 : index
    %94 = vector.load %arg7[%c0_54, %c0_55] : memref<32x128xf32, #tpu.memory_space<vmem>>, vector<32x128xf32>
    %cst_56 = arith.constant dense<0.000000e+00> : vector<8x128xf32>
    %95 = tpu.matmul %82, %94, %cst_56 {dimension_numbers = #tpu.dot_dimension_numbers<[1], [0], [0], [1], [0, 0, 1, 1], [], []>} : vector<8x32xf32>, vector<32x128xf32>, vector<8x128xf32> -> vector<8x128xf32>
    %96 = arith.index_cast %c1_i32_49 : i32 to index
    %c0_57 = arith.constant 0 : index
    %c0_58 = arith.constant 0 : index
    %97 = vector.load %arg12[%96, %c0_57, %c0_58] : memref<3x8x128xf32, #tpu.memory_space<vmem>>, vector<1x8x128xf32>
    %98 = vector.shape_cast %97 : vector<1x8x128xf32> to vector<8x128xf32>
    %99 = arith.addf %98, %93 : vector<8x128xf32>
    %100 = arith.index_cast %91 : i32 to index
    %c0_59 = arith.constant 0 : index
    %c0_60 = arith.constant 0 : index
    %101 = vector.load %arg13[%100, %c0_59, %c0_60] : memref<3x8x128xf32, #tpu.memory_space<vmem>>, vector<1x8x128xf32>
    %102 = vector.shape_cast %101 : vector<1x8x128xf32> to vector<8x128xf32>
    %103 = arith.addf %102, %95 : vector<8x128xf32>
    %104 = vector.extract_strided_slice %99 {offsets = [0, 0], sizes = [8, 96], strides = [1, 1]} : vector<8x128xf32> to vector<8x96xf32>
    %105 = arith.negf %104 : vector<8x96xf32>
    %106 = math.exp %105 : vector<8x96xf32>
    %cst_61 = arith.constant 1.000000e+00 : f32
    %107 = vector.broadcast %cst_61 : f32 to vector<8x96xf32>
    %108 = arith.addf %107, %106 : vector<8x96xf32>
    %109 = arith.divf %107, %108 : vector<8x96xf32>
    %110 = vector.extract_strided_slice %99 {offsets = [0, 96], sizes = [8, 32], strides = [1, 1]} : vector<8x128xf32> to vector<8x32xf32>
    %111 = math.tanh %110 : vector<8x32xf32>
    %112 = vector.extract_strided_slice %103 {offsets = [0, 0], sizes = [8, 96], strides = [1, 1]} : vector<8x128xf32> to vector<8x96xf32>
    %113 = arith.negf %112 : vector<8x96xf32>
    %114 = math.exp %113 : vector<8x96xf32>
    %cst_62 = arith.constant 1.000000e+00 : f32
    %115 = vector.broadcast %cst_62 : f32 to vector<8x96xf32>
    %116 = arith.addf %115, %114 : vector<8x96xf32>
    %117 = arith.divf %115, %116 : vector<8x96xf32>
    %118 = vector.extract_strided_slice %103 {offsets = [0, 96], sizes = [8, 32], strides = [1, 1]} : vector<8x128xf32> to vector<8x32xf32>
    %119 = math.tanh %118 : vector<8x32xf32>
    %120 = vector.extract_strided_slice %109 {offsets = [0, 32], sizes = [8, 32], strides = [1, 1]} : vector<8x96xf32> to vector<8x32xf32>
    %121 = arith.mulf %120, %62 : vector<8x32xf32>
    %122 = vector.extract_strided_slice %109 {offsets = [0, 0], sizes = [8, 32], strides = [1, 1]} : vector<8x96xf32> to vector<8x32xf32>
    %123 = arith.mulf %122, %111 : vector<8x32xf32>
    %124 = arith.addf %121, %123 : vector<8x32xf32>
    %125 = vector.extract_strided_slice %117 {offsets = [0, 32], sizes = [8, 32], strides = [1, 1]} : vector<8x96xf32> to vector<8x32xf32>
    %126 = arith.mulf %125, %80 : vector<8x32xf32>
    %127 = vector.extract_strided_slice %117 {offsets = [0, 0], sizes = [8, 32], strides = [1, 1]} : vector<8x96xf32> to vector<8x32xf32>
    %128 = arith.mulf %127, %119 : vector<8x32xf32>
    %129 = arith.addf %126, %128 : vector<8x32xf32>
    %130 = vector.extract_strided_slice %109 {offsets = [0, 64], sizes = [8, 32], strides = [1, 1]} : vector<8x96xf32> to vector<8x32xf32>
    %131 = math.tanh %124 : vector<8x32xf32>
    %132 = arith.mulf %130, %131 : vector<8x32xf32>
    %133 = vector.extract_strided_slice %117 {offsets = [0, 64], sizes = [8, 32], strides = [1, 1]} : vector<8x96xf32> to vector<8x32xf32>
    %134 = math.tanh %129 : vector<8x32xf32>
    %135 = arith.mulf %133, %134 : vector<8x32xf32>
    %c3_i32_63 = arith.constant 3 : i32
    %136 = arith.muli %arg1, %c3_i32_63 : i32
    %137 = arith.addi %136, %c1_i32_49 : i32
    %c1_i32_64 = arith.constant 1 : i32
    %138 = arith.cmpi sge, %137, %c1_i32_64 : i32
    %139 = arith.extui %138 : i1 to i32
    %140 = arith.sitofp %139 : i32 to f32
    %141 = vector.broadcast %140 : f32 to vector<8x32xf32>
    %142 = arith.mulf %129, %141 : vector<8x32xf32>
    %143 = vector.broadcast %140 : f32 to vector<8x32xf32>
    %144 = arith.mulf %135, %143 : vector<8x32xf32>
    %145 = arith.index_cast %c1_i32_49 : i32 to index
    %c0_65 = arith.constant 0 : index
    %c0_66 = arith.constant 0 : index
    %146 = vector.load %arg10[%145, %c0_65, %c0_66] : memref<3x8x32xf32, #tpu.memory_space<vmem>>, vector<1x8x32xf32>
    %147 = vector.shape_cast %146 : vector<1x8x32xf32> to vector<8x32xf32>
    %148 = vector.shape_cast %132 : vector<8x32xf32> to vector<1x8x32xf32>
    tpu.vector_store %arg10[%145, %c0_65, %c0_66], %148 {strides = array<i32>} : memref<3x8x32xf32, #tpu.memory_space<vmem>>, vector<1x8x32xf32>,
    %149 = arith.index_cast %91 : i32 to index
    %c0_67 = arith.constant 0 : index
    %c0_68 = arith.constant 0 : index
    %150 = vector.load %arg11[%149, %c0_67, %c0_68] : memref<3x8x32xf32, #tpu.memory_space<vmem>>, vector<1x8x32xf32>
    %151 = vector.shape_cast %150 : vector<1x8x32xf32> to vector<8x32xf32>
    %152 = vector.shape_cast %144 : vector<8x32xf32> to vector<1x8x32xf32>
    tpu.vector_store %arg11[%149, %c0_67, %c0_68], %152 {strides = array<i32>} : memref<3x8x32xf32, #tpu.memory_space<vmem>>, vector<1x8x32xf32>,
    %c2_i32_69 = arith.constant 2 : i32
    %c2_i32_70 = arith.constant 2 : i32
    %153 = arith.subi %c2_i32_70, %c2_i32_69 : i32
    %c0_71 = arith.constant 0 : index
    %c0_72 = arith.constant 0 : index
    %154 = vector.load %arg6[%c0_71, %c0_72] : memref<32x128xf32, #tpu.memory_space<vmem>>, vector<32x128xf32>
    %cst_73 = arith.constant dense<0.000000e+00> : vector<8x128xf32>
    %155 = tpu.matmul %132, %154, %cst_73 {dimension_numbers = #tpu.dot_dimension_numbers<[1], [0], [0], [1], [0, 0, 1, 1], [], []>} : vector<8x32xf32>, vector<32x128xf32>, vector<8x128xf32> -> vector<8x128xf32>
    %c0_74 = arith.constant 0 : index
    %c0_75 = arith.constant 0 : index
    %156 = vector.load %arg7[%c0_74, %c0_75] : memref<32x128xf32, #tpu.memory_space<vmem>>, vector<32x128xf32>
    %cst_76 = arith.constant dense<0.000000e+00> : vector<8x128xf32>
    %157 = tpu.matmul %144, %156, %cst_76 {dimension_numbers = #tpu.dot_dimension_numbers<[1], [0], [0], [1], [0, 0, 1, 1], [], []>} : vector<8x32xf32>, vector<32x128xf32>, vector<8x128xf32> -> vector<8x128xf32>
    %158 = arith.index_cast %c2_i32_69 : i32 to index
    %c0_77 = arith.constant 0 : index
    %c0_78 = arith.constant 0 : index
    %159 = vector.load %arg12[%158, %c0_77, %c0_78] : memref<3x8x128xf32, #tpu.memory_space<vmem>>, vector<1x8x128xf32>
    %160 = vector.shape_cast %159 : vector<1x8x128xf32> to vector<8x128xf32>
    %161 = arith.addf %160, %155 : vector<8x128xf32>
    %162 = arith.index_cast %153 : i32 to index
    %c0_79 = arith.constant 0 : index
    %c0_80 = arith.constant 0 : index
    %163 = vector.load %arg13[%162, %c0_79, %c0_80] : memref<3x8x128xf32, #tpu.memory_space<vmem>>, vector<1x8x128xf32>
    %164 = vector.shape_cast %163 : vector<1x8x128xf32> to vector<8x128xf32>
    %165 = arith.addf %164, %157 : vector<8x128xf32>
    %166 = vector.extract_strided_slice %161 {offsets = [0, 0], sizes = [8, 96], strides = [1, 1]} : vector<8x128xf32> to vector<8x96xf32>
    %167 = arith.negf %166 : vector<8x96xf32>
    %168 = math.exp %167 : vector<8x96xf32>
    %cst_81 = arith.constant 1.000000e+00 : f32
    %169 = vector.broadcast %cst_81 : f32 to vector<8x96xf32>
    %170 = arith.addf %169, %168 : vector<8x96xf32>
    %171 = arith.divf %169, %170 : vector<8x96xf32>
    %172 = vector.extract_strided_slice %161 {offsets = [0, 96], sizes = [8, 32], strides = [1, 1]} : vector<8x128xf32> to vector<8x32xf32>
    %173 = math.tanh %172 : vector<8x32xf32>
    %174 = vector.extract_strided_slice %165 {offsets = [0, 0], sizes = [8, 96], strides = [1, 1]} : vector<8x128xf32> to vector<8x96xf32>
    %175 = arith.negf %174 : vector<8x96xf32>
    %176 = math.exp %175 : vector<8x96xf32>
    %cst_82 = arith.constant 1.000000e+00 : f32
    %177 = vector.broadcast %cst_82 : f32 to vector<8x96xf32>
    %178 = arith.addf %177, %176 : vector<8x96xf32>
    %179 = arith.divf %177, %178 : vector<8x96xf32>
    %180 = vector.extract_strided_slice %165 {offsets = [0, 96], sizes = [8, 32], strides = [1, 1]} : vector<8x128xf32> to vector<8x32xf32>
    %181 = math.tanh %180 : vector<8x32xf32>
    %182 = vector.extract_strided_slice %171 {offsets = [0, 32], sizes = [8, 32], strides = [1, 1]} : vector<8x96xf32> to vector<8x32xf32>
    %183 = arith.mulf %182, %124 : vector<8x32xf32>
    %184 = vector.extract_strided_slice %171 {offsets = [0, 0], sizes = [8, 32], strides = [1, 1]} : vector<8x96xf32> to vector<8x32xf32>
    %185 = arith.mulf %184, %173 : vector<8x32xf32>
    %186 = arith.addf %183, %185 : vector<8x32xf32>
    %187 = vector.extract_strided_slice %179 {offsets = [0, 32], sizes = [8, 32], strides = [1, 1]} : vector<8x96xf32> to vector<8x32xf32>
    %188 = arith.mulf %187, %142 : vector<8x32xf32>
    %189 = vector.extract_strided_slice %179 {offsets = [0, 0], sizes = [8, 32], strides = [1, 1]} : vector<8x96xf32> to vector<8x32xf32>
    %190 = arith.mulf %189, %181 : vector<8x32xf32>
    %191 = arith.addf %188, %190 : vector<8x32xf32>
    %192 = vector.extract_strided_slice %171 {offsets = [0, 64], sizes = [8, 32], strides = [1, 1]} : vector<8x96xf32> to vector<8x32xf32>
    %193 = math.tanh %186 : vector<8x32xf32>
    %194 = arith.mulf %192, %193 : vector<8x32xf32>
    %195 = vector.extract_strided_slice %179 {offsets = [0, 64], sizes = [8, 32], strides = [1, 1]} : vector<8x96xf32> to vector<8x32xf32>
    %196 = math.tanh %191 : vector<8x32xf32>
    %197 = arith.mulf %195, %196 : vector<8x32xf32>
    %c3_i32_83 = arith.constant 3 : i32
    %198 = arith.muli %arg1, %c3_i32_83 : i32
    %199 = arith.addi %198, %c2_i32_69 : i32
    %c1_i32_84 = arith.constant 1 : i32
    %200 = arith.cmpi sge, %199, %c1_i32_84 : i32
    %201 = arith.extui %200 : i1 to i32
    %202 = arith.sitofp %201 : i32 to f32
    %203 = vector.broadcast %202 : f32 to vector<8x32xf32>
    %204 = arith.mulf %191, %203 : vector<8x32xf32>
    %205 = vector.broadcast %202 : f32 to vector<8x32xf32>
    %206 = arith.mulf %197, %205 : vector<8x32xf32>
    %207 = arith.index_cast %c2_i32_69 : i32 to index
    %c0_85 = arith.constant 0 : index
    %c0_86 = arith.constant 0 : index
    %208 = vector.load %arg10[%207, %c0_85, %c0_86] : memref<3x8x32xf32, #tpu.memory_space<vmem>>, vector<1x8x32xf32>
    %209 = vector.shape_cast %208 : vector<1x8x32xf32> to vector<8x32xf32>
    %210 = vector.shape_cast %194 : vector<8x32xf32> to vector<1x8x32xf32>
    tpu.vector_store %arg10[%207, %c0_85, %c0_86], %210 {strides = array<i32>} : memref<3x8x32xf32, #tpu.memory_space<vmem>>, vector<1x8x32xf32>,
    %211 = arith.index_cast %153 : i32 to index
    %c0_87 = arith.constant 0 : index
    %c0_88 = arith.constant 0 : index
    %212 = vector.load %arg11[%211, %c0_87, %c0_88] : memref<3x8x32xf32, #tpu.memory_space<vmem>>, vector<1x8x32xf32>
    %213 = vector.shape_cast %212 : vector<1x8x32xf32> to vector<8x32xf32>
    %214 = vector.shape_cast %206 : vector<8x32xf32> to vector<1x8x32xf32>
    tpu.vector_store %arg11[%211, %c0_87, %c0_88], %214 {strides = array<i32>} : memref<3x8x32xf32, #tpu.memory_space<vmem>>, vector<1x8x32xf32>,
    %c3_i32_89 = arith.constant 3 : i32
    %c0_90 = arith.constant 0 : index
    %c0_91 = arith.constant 0 : index
    %c0_92 = arith.constant 0 : index
    %215 = vector.load %arg14[%c0_90, %c0_91, %c0_92] : memref<2x8x32xf32, #tpu.memory_space<vmem>>, vector<1x8x32xf32>
    %216 = vector.shape_cast %215 : vector<1x8x32xf32> to vector<8x32xf32>
    %217 = vector.shape_cast %194 : vector<8x32xf32> to vector<1x8x32xf32>
    tpu.vector_store %arg14[%c0_90, %c0_91, %c0_92], %217 {strides = array<i32>} : memref<2x8x32xf32, #tpu.memory_space<vmem>>, vector<1x8x32xf32>,
    %c1_93 = arith.constant 1 : index
    %c0_94 = arith.constant 0 : index
    %c0_95 = arith.constant 0 : index
    %218 = vector.load %arg14[%c1_93, %c0_94, %c0_95] : memref<2x8x32xf32, #tpu.memory_space<vmem>>, vector<1x8x32xf32>
    %219 = vector.shape_cast %218 : vector<1x8x32xf32> to vector<8x32xf32>
    %220 = vector.shape_cast %206 : vector<8x32xf32> to vector<1x8x32xf32>
    tpu.vector_store %arg14[%c1_93, %c0_94, %c0_95], %220 {strides = array<i32>} : memref<2x8x32xf32, #tpu.memory_space<vmem>>, vector<1x8x32xf32>,
    %c0_96 = arith.constant 0 : index
    %c0_97 = arith.constant 0 : index
    %c0_98 = arith.constant 0 : index
    %221 = vector.load %arg15[%c0_96, %c0_97, %c0_98] : memref<2x8x32xf32, #tpu.memory_space<vmem>>, vector<1x8x32xf32>
    %222 = vector.shape_cast %221 : vector<1x8x32xf32> to vector<8x32xf32>
    %223 = vector.shape_cast %186 : vector<8x32xf32> to vector<1x8x32xf32>
    tpu.vector_store %arg15[%c0_96, %c0_97, %c0_98], %223 {strides = array<i32>} : memref<2x8x32xf32, #tpu.memory_space<vmem>>, vector<1x8x32xf32>,
    %c1_99 = arith.constant 1 : index
    %c0_100 = arith.constant 0 : index
    %c0_101 = arith.constant 0 : index
    %224 = vector.load %arg15[%c1_99, %c0_100, %c0_101] : memref<2x8x32xf32, #tpu.memory_space<vmem>>, vector<1x8x32xf32>
    %225 = vector.shape_cast %224 : vector<1x8x32xf32> to vector<8x32xf32>
    %226 = vector.shape_cast %204 : vector<8x32xf32> to vector<1x8x32xf32>
    tpu.vector_store %arg15[%c1_99, %c0_100, %c0_101], %226 {strides = array<i32>} : memref<2x8x32xf32, #tpu.memory_space<vmem>>, vector<1x8x32xf32>,
    return
  }
  func.func @transform_0(%arg0: i32, %arg1: i32) -> (i32, i32, i32) {
    %c0_i32 = arith.constant 0 : i32
    %c0_i32_0 = arith.constant 0 : i32
    return %arg1, %arg0, %c0_i32 : i32, i32, i32
  }
  func.func @transform_1(%arg0: i32, %arg1: i32) -> (i32, i32, i32) {
    %c2_i32 = arith.constant 2 : i32
    %0 = arith.subi %c2_i32, %arg1 : i32
    %c0_i32 = arith.constant 0 : i32
    %c0_i32_0 = arith.constant 0 : i32
    return %0, %arg0, %c0_i32 : i32, i32, i32
  }
  func.func @transform_2(%arg0: i32, %arg1: i32) -> (i32, i32) {
    %c0_i32 = arith.constant 0 : i32
    %c0_i32_0 = arith.constant 0 : i32
    %c0_i32_1 = arith.constant 0 : i32
    return %c0_i32, %c0_i32_0 : i32, i32
  }
  func.func @transform_3(%arg0: i32, %arg1: i32) -> (i32, i32) {
    %c0_i32 = arith.constant 0 : i32
    %c0_i32_0 = arith.constant 0 : i32
    %c0_i32_1 = arith.constant 0 : i32
    return %c0_i32, %c0_i32_0 : i32, i32
  }
  func.func @transform_4(%arg0: i32, %arg1: i32) -> (i32, i32) {
    %c0_i32 = arith.constant 0 : i32
    %c0_i32_0 = arith.constant 0 : i32
    %c0_i32_1 = arith.constant 0 : i32
    return %c0_i32, %c0_i32_0 : i32, i32
  }
  func.func @transform_5(%arg0: i32, %arg1: i32) -> (i32, i32) {
    %c0_i32 = arith.constant 0 : i32
    %c0_i32_0 = arith.constant 0 : i32
    %c0_i32_1 = arith.constant 0 : i32
    return %c0_i32, %c0_i32_0 : i32, i32
  }
  func.func @transform_6(%arg0: i32, %arg1: i32) -> (i32, i32) {
    %c0_i32 = arith.constant 0 : i32
    %c0_i32_0 = arith.constant 0 : i32
    %c0_i32_1 = arith.constant 0 : i32
    return %c0_i32, %c0_i32_0 : i32, i32
  }
  func.func @transform_7(%arg0: i32, %arg1: i32) -> (i32, i32) {
    %c0_i32 = arith.constant 0 : i32
    %c0_i32_0 = arith.constant 0 : i32
    %c0_i32_1 = arith.constant 0 : i32
    return %c0_i32, %c0_i32_0 : i32, i32
  }
  func.func @transform_8(%arg0: i32, %arg1: i32) -> (i32, i32, i32) {
    %c0_i32 = arith.constant 0 : i32
    %c0_i32_0 = arith.constant 0 : i32
    return %arg1, %arg0, %c0_i32 : i32, i32, i32
  }
  func.func @transform_9(%arg0: i32, %arg1: i32) -> (i32, i32, i32) {
    %c2_i32 = arith.constant 2 : i32
    %0 = arith.subi %c2_i32, %arg1 : i32
    %c0_i32 = arith.constant 0 : i32
    %c0_i32_0 = arith.constant 0 : i32
    return %0, %arg0, %c0_i32 : i32, i32, i32
  }
}

</mosaic_0001>

<llo_original>
// kernel: tpu_custom_call.1
$region0: #{tpu_custom_call.1}
  #allocation0 [shape = 'u32[]', space=smem, size = 0x4, offset = 0x4, fixed_abs, tag = 'smem constant byte address 0x4 - core index']
  #allocation1 [shape = 'u32[144,128]{1,0:T(1,128)}', space=vmem, size = 0x12000, scoped, tag = 'internal scratch']
  #allocation2 [shape = 'f32[3,8,128]{2,1,0:T(8,128)}', space=vmem, size = 0x3000, scoped, tag = 'scratch operand']
  #allocation3 [shape = 'f32[3,8,128]{2,1,0:T(8,128)}', space=vmem, size = 0x3000, scoped, tag = 'scratch operand']
  #allocation4 [shape = 'f32[2,8,32]{2,1,0:T(8,128)}', space=vmem, size = 0x2000, scoped, tag = 'scratch operand']
  #allocation5 [shape = 'f32[2,8,32]{2,1,0:T(8,128)}', space=vmem, size = 0x2000, scoped, tag = 'scratch operand']
  %s0 = inlined_call_operand.hbm [shape: f32[9,8,16], index: 0, kind: input, shape index: {}]
  %s1 = inlined_call_operand.hbm [shape: f32[9,8,16], index: 1, kind: input, shape index: {}]
  %s2 = inlined_call_operand.hbm [shape: f32[16,128], index: 2, kind: input, shape index: {}]
  %s3 = inlined_call_operand.hbm [shape: f32[16,128], index: 3, kind: input, shape index: {}]
  %s4 = inlined_call_operand.hbm [shape: f32[32,128], index: 4, kind: input, shape index: {}]
  %s5 = inlined_call_operand.hbm [shape: f32[32,128], index: 5, kind: input, shape index: {}]
  %s6 = inlined_call_operand.vmem [shape: f32[1,128], index: 6, kind: input, shape index: {}]
  %s7 = inlined_call_operand.vmem [shape: f32[1,128], index: 7, kind: input, shape index: {}]
  %s8 = inlined_call_operand.hbm [shape: f32[9,8,32], index: 8, kind: output, shape index: {0}]
  %s9 = inlined_call_operand.hbm [shape: f32[9,8,32], index: 9, kind: output, shape index: {1}]
  %10 = xla_tuple %s8, %s9
  %s11 = sld [smem:[#allocation0]]
  $region101: #{tpu_custom_call.1} parent=0
    _
  %s13 = ssub.s32 1, %s11
  %s14 = scalar_select 0, %s13, %s11
  $region1: #{tpu_custom_call.1} parent=0
    #allocation6 [shape = 'u8[24576]{0}', space=vmem, size = 0x6000, scoped, tag = 'input window, operand 0']
    #allocation7 [shape = 's32[2]{0}', space=sflag, size = 0x8, scoped, tag = 'scoped memory for tpu_custom_call.1']
    #allocation8 [shape = 's32[2]{0}', space=sflag, size = 0x8, scoped, tag = 'scoped memory for tpu_custom_call.1']
    #allocation9 [shape = 'u8[24576]{0}', space=vmem, size = 0x6000, scoped, tag = 'input window, operand 1']
    #allocation10 [shape = 's32[2]{0}', space=sflag, size = 0x8, scoped, tag = 'scoped memory for tpu_custom_call.1']
    #allocation11 [shape = 'u8[8192]{0}', space=vmem, size = 0x2000, scoped, tag = 'input window, operand 2, single buffered']
    #allocation12 [shape = 'u8[8192]{0}', space=vmem, size = 0x2000, scoped, tag = 'input window, operand 3, single buffered']
    #allocation13 [shape = 's32[1]{0}', space=sflag, size = 0x4, scoped, tag = 'scoped memory for tpu_custom_call.1']
    #allocation14 [shape = 'u8[16384]{0}', space=vmem, size = 0x4000, scoped, tag = 'input window, operand 4, single buffered']
    #allocation15 [shape = 'u8[16384]{0}', space=vmem, size = 0x4000, scoped, tag = 'input window, operand 5, single buffered']
    #allocation16 [shape = 's32[1]{0}', space=sflag, size = 0x4, scoped, tag = 'scoped memory for tpu_custom_call.1']
    #allocation17 [shape = 'u8[24576]{0}', space=vmem, size = 0x6000, scoped, tag = 'output window, operand 0']
    #allocation18 [shape = 'u8[24576]{0}', space=vmem, size = 0x6000, scoped, tag = 'output window, operand 1']
    #allocation19 [shape = 's32[2]{0}', space=sflag, size = 0x8, scoped, tag = 'scoped memory for tpu_custom_call.1']
    %15 = vsyncpa [#allocation7], 0
    %s16 = scalar_lea.sflag [#allocation7], 1
    %17 = vsyncpa %s16, 0
    %18 = vsyncpa [#allocation10], 0
    %s19 = scalar_lea.sflag [#allocation10], 1
    %20 = vsyncpa %s19, 0
    %21 = vsyncpa [#allocation13], 0
    %22 = vsyncpa [#allocation16], 0
    %23 = vsyncpa [#allocation8], 0
    %s24 = scalar_lea.sflag [#allocation8], 1
    %25 = vsyncpa %s24, 0
    %26 = vsyncpa [#allocation19], 0
    %s27 = scalar_lea.sflag [#allocation19], 1
    %28 = vsyncpa %s27, 0
    loop: start=0, step=1, limit=5
    $region2: #{tpu_custom_call.1} parent=1 // loop_pre_header
      _
    $region3: #{tpu_custom_call.1} parent=1 // loop_header
      %s30 = sphi 0, %s34
      %p31 = scmp.ge.s32.totalorder %s30, 5
      %s37 = sphi 0, %s49
      %s38 = sphi 0, %s45
      %s39 = sphi 0, %s37
      %s40 = sphi 0, %s38
      %s41 = sphi 0, %s39
      %s42 = sphi 0, %s40
      %s54 = sphi 0, %s56
      %s57 = sphi 0, %s54
      %s58 = sphi 0, %s57
      %s74 = sphi 0, %s58
      %s84 = sphi 0, %s86
      %s87 = sphi 0, %s84
      %s88 = sphi 0, %s87
      %s104 = sphi 0, %s88
      %s108 = sphi 0, %s108
      %s110 = sphi 0, %s108
      %s111 = sphi 0, %s110
      %s125 = sphi 0, %s111
      %s129 = sphi 0, %s129
      %s131 = sphi 0, %s129
      %s132 = sphi 0, %s131
      %s146 = sphi 0, %s132
      %s150 = sphi 0, %s150
      %s152 = sphi 0, %s150
      %s153 = sphi 0, %s152
      %s167 = sphi 0, %s153
      %s171 = sphi 0, %s171
      %s173 = sphi 0, %s171
      %s174 = sphi 0, %s173
      %s188 = sphi 0, %s174
      %s192 = sphi 0, %s192
      %s194 = sphi 0, %s192
      %s195 = sphi 0, %s194
      %s209 = sphi 0, %s195
      %s213 = sphi 0, %s213
      %s215 = sphi 0, %s213
      %s216 = sphi 0, %s215
      %s230 = sphi 0, %s216
      %s238 = sphi 0, %s240
      %s241 = sphi 0, %s238
      %s242 = sphi 0, %s241
      %s258 = sphi 0, %s242
      %s268 = sphi 0, %s270
      %s271 = sphi 0, %s268
      %s272 = sphi 0, %s271
      %s288 = sphi 0, %s272
    $region4: #{tpu_custom_call.1} parent=1 // loop_header_branch
      %33 = sbr.rel (%p31) target = $region8
    $region5: #{tpu_custom_call.1} parent=1 // loop_body
      %s35 = ssub.s32 %s30, 1
      %s36 = ssub.s32 %s30, 2
      %s43 = sadd.s32 1, %s38
      %p44 = scmp.ge.s32.totalorder %s43, 3
      %s45 = scalar_select %p44, 0, %s43
      %s46 = sadd.s32 1, %s37
      %s47 = scalar_select %p44, %s46, %s37
      %p48 = scmp.ge.s32.totalorder %s47, 1
      %s49 = scalar_select %p48, 0, %s47
      %s50 = ssub.s32 %s38, %s45
      %s51 = ssub.s32 %s37, %s49
      %s52 = sor.u32 %s50, %s51
      %p53 = scmp.eq.s32.totalorder %s52, 0
      %s55 = sadd.s32 %s54, 1
      %s56 = scalar_select %p53, %s54, %s55
      %p59 = pneg %p53
      %p60 = scmp.eq.s32.totalorder %s30, 2
      %p61 = por %p59, %p60
      %p62 = scmp.ne.s32.totalorder %s54, %s57
      %p63 = scmp.eq.s32.totalorder %s30, 0
      %p64 = por %p62, %p63
      %p65 = scmp.ne.s32.totalorder %s54, %s57
      %p66 = scmp.eq.s32.totalorder %s35, 2
      %p67 = por %p65, %p66
      %p68 = scmp.ne.s32.totalorder %s57, %s58
      %p69 = scmp.eq.s32.totalorder %s35, 0
      %p70 = por %p68, %p69
      %p71 = scmp.ne.s32.totalorder %s57, %s58
      %p72 = scmp.eq.s32.totalorder %s36, 2
      %p73 = por %p71, %p72
      %p75 = scmp.ne.s32.totalorder %s58, %s74
      %p76 = scmp.eq.s32.totalorder %s36, 0
      %p77 = por %p75, %p76
      %s78 = ssub.s32 2, %s38
      %s79 = ssub.s32 2, %s45
      %s80 = ssub.s32 %s78, %s79
      %s81 = ssub.s32 %s37, %s49
      %s82 = sor.u32 %s80, %s81
      %p83 = scmp.eq.s32.totalorder %s82, 0
      %s85 = sadd.s32 %s84, 1
      %s86 = scalar_select %p83, %s84, %s85
      %p89 = pneg %p83
      %p90 = scmp.eq.s32.totalorder %s30, 2
      %p91 = por %p89, %p90
      %p92 = scmp.ne.s32.totalorder %s84, %s87
      %p93 = scmp.eq.s32.totalorder %s30, 0
      %p94 = por %p92, %p93
      %p95 = scmp.ne.s32.totalorder %s84, %s87
      %p96 = scmp.eq.s32.totalorder %s35, 2
      %p97 = por %p95, %p96
      %p98 = scmp.ne.s32.totalorder %s87, %s88
      %p99 = scmp.eq.s32.totalorder %s35, 0
      %p100 = por %p98, %p99
      %p101 = scmp.ne.s32.totalorder %s87, %s88
      %p102 = scmp.eq.s32.totalorder %s36, 2
      %p103 = por %p101, %p102
      %p105 = scmp.ne.s32.totalorder %s88, %s104
      %p106 = scmp.eq.s32.totalorder %s36, 0
      %p107 = por %p105, %p106
      %s109 = sadd.s32 %s108, 1
      %p112 = scmp.eq.s32.totalorder %s30, 2
      %p113 = scmp.ne.s32.totalorder %s108, %s110
      %p114 = scmp.eq.s32.totalorder %s30, 0
      %p115 = por %p113, %p114
      %p116 = scmp.ne.s32.totalorder %s108, %s110
      %p117 = scmp.eq.s32.totalorder %s35, 2
      %p118 = por %p116, %p117
      %p119 = scmp.ne.s32.totalorder %s110, %s111
      %p120 = scmp.eq.s32.totalorder %s35, 0
      %p121 = por %p119, %p120
      %p122 = scmp.ne.s32.totalorder %s110, %s111
      %p123 = scmp.eq.s32.totalorder %s36, 2
      %p124 = por %p122, %p123
      %p126 = scmp.ne.s32.totalorder %s111, %s125
      %p127 = scmp.eq.s32.totalorder %s36, 0
      %p128 = por %p126, %p127
      %s130 = sadd.s32 %s129, 1
      %p133 = scmp.eq.s32.totalorder %s30, 2
      %p134 = scmp.ne.s32.totalorder %s129, %s131
      %p135 = scmp.eq.s32.totalorder %s30, 0
      %p136 = por %p134, %p135
      %p137 = scmp.ne.s32.totalorder %s129, %s131
      %p138 = scmp.eq.s32.totalorder %s35, 2
      %p139 = por %p137, %p138
      %p140 = scmp.ne.s32.totalorder %s131, %s132
      %p141 = scmp.eq.s32.totalorder %s35, 0
      %p142 = por %p140, %p141
      %p143 = scmp.ne.s32.totalorder %s131, %s132
      %p144 = scmp.eq.s32.totalorder %s36, 2
      %p145 = por %p143, %p144
      %p147 = scmp.ne.s32.totalorder %s132, %s146
      %p148 = scmp.eq.s32.totalorder %s36, 0
      %p149 = por %p147, %p148
      %s151 = sadd.s32 %s150, 1
      %p154 = scmp.eq.s32.totalorder %s30, 2
      %p155 = scmp.ne.s32.totalorder %s150, %s152
      %p156 = scmp.eq.s32.totalorder %s30, 0
      %p157 = por %p155, %p156
      %p158 = scmp.ne.s32.totalorder %s150, %s152
      %p159 = scmp.eq.s32.totalorder %s35, 2
      %p160 = por %p158, %p159
      %p161 = scmp.ne.s32.totalorder %s152, %s153
      %p162 = scmp.eq.s32.totalorder %s35, 0
      %p163 = por %p161, %p162
      %p164 = scmp.ne.s32.totalorder %s152, %s153
      %p165 = scmp.eq.s32.totalorder %s36, 2
      %p166 = por %p164, %p165
      %p168 = scmp.ne.s32.totalorder %s153, %s167
      %p169 = scmp.eq.s32.totalorder %s36, 0
      %p170 = por %p168, %p169
      %s172 = sadd.s32 %s171, 1
      %p175 = scmp.eq.s32.totalorder %s30, 2
      %p176 = scmp.ne.s32.totalorder %s171, %s173
      %p177 = scmp.eq.s32.totalorder %s30, 0
      %p178 = por %p176, %p177
      %p179 = scmp.ne.s32.totalorder %s171, %s173
      %p180 = scmp.eq.s32.totalorder %s35, 2
      %p181 = por %p179, %p180
      %p182 = scmp.ne.s32.totalorder %s173, %s174
      %p183 = scmp.eq.s32.totalorder %s35, 0
      %p184 = por %p182, %p183
      %p185 = scmp.ne.s32.totalorder %s173, %s174
      %p186 = scmp.eq.s32.totalorder %s36, 2
      %p187 = por %p185, %p186
      %p189 = scmp.ne.s32.totalorder %s174, %s188
      %p190 = scmp.eq.s32.totalorder %s36, 0
      %p191 = por %p189, %p190
      %s193 = sadd.s32 %s192, 1
      %p196 = scmp.eq.s32.totalorder %s30, 2
      %p197 = scmp.ne.s32.totalorder %s192, %s194
      %p198 = scmp.eq.s32.totalorder %s30, 0
      %p199 = por %p197, %p198
      %p200 = scmp.ne.s32.totalorder %s192, %s194
      %p201 = scmp.eq.s32.totalorder %s35, 2
      %p202 = por %p200, %p201
      %p203 = scmp.ne.s32.totalorder %s194, %s195
      %p204 = scmp.eq.s32.totalorder %s35, 0
      %p205 = por %p203, %p204
      %p206 = scmp.ne.s32.totalorder %s194, %s195
      %p207 = scmp.eq.s32.totalorder %s36, 2
      %p208 = por %p206, %p207
      %p210 = scmp.ne.s32.totalorder %s195, %s209
      %p211 = scmp.eq.s32.totalorder %s36, 0
      %p212 = por %p210, %p211
      %s214 = sadd.s32 %s213, 1
      %p217 = scmp.eq.s32.totalorder %s30, 2
      %p218 = scmp.ne.s32.totalorder %s213, %s215
      %p219 = scmp.eq.s32.totalorder %s30, 0
      %p220 = por %p218, %p219
      %p221 = scmp.ne.s32.totalorder %s213, %s215
      %p222 = scmp.eq.s32.totalorder %s35, 2
      %p223 = por %p221, %p222
      %p224 = scmp.ne.s32.totalorder %s215, %s216
      %p225 = scmp.eq.s32.totalorder %s35, 0
      %p226 = por %p224, %p225
      %p227 = scmp.ne.s32.totalorder %s215, %s216
      %p228 = scmp.eq.s32.totalorder %s36, 2
      %p229 = por %p227, %p228
      %p231 = scmp.ne.s32.totalorder %s216, %s230
      %p232 = scmp.eq.s32.totalorder %s36, 0
      %p233 = por %p231, %p232
      %s234 = ssub.s32 %s38, %s45
      %s235 = ssub.s32 %s37, %s49
      %s236 = sor.u32 %s234, %s235
      %p237 = scmp.eq.s32.totalorder %s236, 0
      %s239 = sadd.s32 %s238, 1
      %s240 = scalar_select %p237, %s238, %s239
      %p243 = pneg %p237
      %p244 = scmp.eq.s32.totalorder %s30, 2
      %p245 = por %p243, %p244
      %p246 = scmp.ne.s32.totalorder %s238, %s241
      %p247 = scmp.eq.s32.totalorder %s30, 0
      %p248 = por %p246, %p247
      %p249 = scmp.ne.s32.totalorder %s238, %s241
      %p250 = scmp.eq.s32.totalorder %s35, 2
      %p251 = por %p249, %p250
      %p252 = scmp.ne.s32.totalorder %s241, %s242
      %p253 = scmp.eq.s32.totalorder %s35, 0
      %p254 = por %p252, %p253
      %p255 = scmp.ne.s32.totalorder %s241, %s242
      %p256 = scmp.eq.s32.totalorder %s36, 2
      %p257 = por %p255, %p256
      %p259 = scmp.ne.s32.totalorder %s242, %s258
      %p260 = scmp.eq.s32.totalorder %s36, 0
      %p261 = por %p259, %p260
      %s262 = ssub.s32 2, %s38
      %s263 = ssub.s32 2, %s45
      %s264 = ssub.s32 %s262, %s263
      %s265 = ssub.s32 %s37, %s49
      %s266 = sor.u32 %s264, %s265
      %p267 = scmp.eq.s32.totalorder %s266, 0
      %s269 = sadd.s32 %s268, 1
      %s270 = scalar_select %p267, %s268, %s269
      %p273 = pneg %p267
      %p274 = scmp.eq.s32.totalorder %s30, 2
      %p275 = por %p273, %p274
      %p276 = scmp.ne.s32.totalorder %s268, %s271
      %p277 = scmp.eq.s32.totalorder %s30, 0
      %p278 = por %p276, %p277
      %p279 = scmp.ne.s32.totalorder %s268, %s271
      %p280 = scmp.eq.s32.totalorder %s35, 2
      %p281 = por %p279, %p280
      %p282 = scmp.ne.s32.totalorder %s271, %s272
      %p283 = scmp.eq.s32.totalorder %s35, 0
      %p284 = por %p282, %p283
      %p285 = scmp.ne.s32.totalorder %s271, %s272
      %p286 = scmp.eq.s32.totalorder %s36, 2
      %p287 = por %p285, %p286
      %p289 = scmp.ne.s32.totalorder %s272, %s288
      %p290 = scmp.eq.s32.totalorder %s36, 0
      %p291 = por %p289, %p290
      %p292 = scmp.le.s32.totalorder 1, %s30
      %p293 = scmp.lt.s32.totalorder %s30, 4
      %p294 = pnand %p292, %p293
      %p295 = pneg %p294
      // Predicated region
      $region9: #{tpu_custom_call.1} parent=5 // pred_check
        _
      $region10: #{tpu_custom_call.1} parent=5 // pred_check_branch
        %297 = sbr.rel (%p294) target = $region12
      $region11: #{tpu_custom_call.1} parent=5 // pred_region
        %s298 = ssub.s32 %s30, 1
        // Predicated region
        $region13: #{tpu_custom_call.1} parent=11 // pred_check
          %p299 = pneg %p121
        $region14: #{tpu_custom_call.1} parent=11 // pred_check_branch
          %301 = sbr.rel (%p299) target = $region16
        $region15: #{tpu_custom_call.1} parent=11 // pred_region
          %s303 = ssub.s32 256, 256
          %304 = vsyncadd [#allocation10], %s303
          %s305 = sshll.u32 [#allocation11], 4
          %s306 = int_to_ptr.vmem [resolvable:$true] %s305
          %311 = dma.hbm_to_vmem [thread:$0]  %s2, 256, %s306, [#allocation10], 128, 128, 8
        $region16: #{tpu_custom_call.1} parent=11 // pred_fallthru
          _
        // Predicated region
        $region17: #{tpu_custom_call.1} parent=11 // pred_check
          %p312 = pneg %p142
        $region18: #{tpu_custom_call.1} parent=11 // pred_check_branch
          %314 = sbr.rel (%p312) target = $region20
        $region19: #{tpu_custom_call.1} parent=11 // pred_region
          %s316 = ssub.s32 256, 256
          %317 = vsyncadd [#allocation13], %s316
          %s318 = sshll.u32 [#allocation12], 4
          %s319 = int_to_ptr.vmem [resolvable:$true] %s318
          %324 = dma.hbm_to_vmem [thread:$0]  %s3, 256, %s319, [#allocation13], 128, 128, 8
        $region20: #{tpu_custom_call.1} parent=11 // pred_fallthru
          _
        // Predicated region
        $region21: #{tpu_custom_call.1} parent=11 // pred_check
          %p325 = pneg %p163
        $region22: #{tpu_custom_call.1} parent=11 // pred_check_branch
          %327 = sbr.rel (%p325) target = $region24
        $region23: #{tpu_custom_call.1} parent=11 // pred_region
          %s329 = ssub.s32 512, 512
          %330 = vsyncadd [#allocation13], %s329
          %s331 = sshll.u32 [#allocation14], 4
          %s332 = int_to_ptr.vmem [resolvable:$true] %s331
          %337 = dma.hbm_to_vmem [thread:$0]  %s4, 512, %s332, [#allocation13], 128, 128, 8
        $region24: #{tpu_custom_call.1} parent=11 // pred_fallthru
          _
        // Predicated region
        $region25: #{tpu_custom_call.1} parent=11 // pred_check
          %p338 = pneg %p184
        $region26: #{tpu_custom_call.1} parent=11 // pred_check_branch
          %340 = sbr.rel (%p338) target = $region28
        $region27: #{tpu_custom_call.1} parent=11 // pred_region
          %s342 = ssub.s32 512, 512
          %343 = vsyncadd [#allocation16], %s342
          %s344 = sshll.u32 [#allocation15], 4
          %s345 = int_to_ptr.vmem [resolvable:$true] %s344
          %350 = dma.hbm_to_vmem [thread:$0]  %s5, 512, %s345, [#allocation16], 128, 128, 8
        $region28: #{tpu_custom_call.1} parent=11 // pred_fallthru
          _
        // Predicated region
        $region29: #{tpu_custom_call.1} parent=11 // pred_check
          %p351 = pneg %p205
        $region30: #{tpu_custom_call.1} parent=11 // pred_check_branch
          %353 = sbr.rel (%p351) target = $region32
        $region31: #{tpu_custom_call.1} parent=11 // pred_region
          _
        $region32: #{tpu_custom_call.1} parent=11 // pred_fallthru
          _
        // Predicated region
        $region33: #{tpu_custom_call.1} parent=11 // pred_check
          %p354 = pneg %p226
        $region34: #{tpu_custom_call.1} parent=11 // pred_check_branch
          %356 = sbr.rel (%p354) target = $region36
        $region35: #{tpu_custom_call.1} parent=11 // pred_region
          _
        $region36: #{tpu_custom_call.1} parent=11 // pred_fallthru
          _
      $region12: #{tpu_custom_call.1} parent=5 // pred_fallthru
        _
      %p357 = scmp.lt.s32.totalorder %s30, 3
      // Predicated region
      $region37: #{tpu_custom_call.1} parent=5 // pred_check
        %p358 = pneg %p357
      $region38: #{tpu_custom_call.1} parent=5 // pred_check_branch
        %360 = sbr.rel (%p358) target = $region40
      $region39: #{tpu_custom_call.1} parent=5 // pred_region
        // Predicated region
        $region41: #{tpu_custom_call.1} parent=39 // pred_check
          %p361 = pneg %p64
        $region42: #{tpu_custom_call.1} parent=39 // pred_check_branch
          %363 = sbr.rel (%p361) target = $region44
        $region43: #{tpu_custom_call.1} parent=39 // pred_region
          %s364 = sand.u32 %s54, 1
          %s365 = scalar_lea.sflag [#allocation7], %s364
          %s366 = sand.u32 %s54, 1
          %s367 = smul.addr %s366, 24
          %s368 = scalar_lea.vmem [#allocation6], %s367
          %s369 = smul.u32 3, %s38
          %s371 = ssub.s32 384, 384
          %372 = vsyncadd %s365, %s371
          %s373 = sadd.s32 %s37, %s369
          %s374 = smul.addr %s373, 128
          %s375 = scalar_lea.hbm %s0, %s374
          %s376 = sshll.u32 %s368, 4
          %s377 = int_to_ptr.vmem [resolvable:$true] %s376
          %382 = dma.hbm_to_vmem [thread:$0]  %s375, 384, %s377, %s365, 128, 128, 8
        $region44: #{tpu_custom_call.1} parent=39 // pred_fallthru
          _
        // Predicated region
        $region45: #{tpu_custom_call.1} parent=39 // pred_check
          %p383 = pneg %p94
        $region46: #{tpu_custom_call.1} parent=39 // pred_check_branch
          %385 = sbr.rel (%p383) target = $region48
        $region47: #{tpu_custom_call.1} parent=39 // pred_region
          %s386 = sand.u32 %s30, 1
          %s387 = scalar_lea.sflag [#allocation10], %s386
          %s388 = sand.u32 %s84, 1
          %s389 = smul.addr %s388, 24
          %s390 = scalar_lea.vmem [#allocation9], %s389
          %s391 = ssub.s32 2, %s38
          %s392 = smul.u32 3, %s391
          %s394 = ssub.s32 384, 384
          %395 = vsyncadd %s387, %s394
          %s396 = sadd.s32 %s37, %s392
          %s397 = smul.addr %s396, 128
          %s398 = scalar_lea.hbm %s1, %s397
          %s399 = sshll.u32 %s390, 4
          %s400 = int_to_ptr.vmem [resolvable:$true] %s399
          %405 = dma.hbm_to_vmem [thread:$0]  %s398, 384, %s400, %s387, 128, 128, 8
        $region48: #{tpu_custom_call.1} parent=39 // pred_fallthru
          _
      $region40: #{tpu_custom_call.1} parent=5 // pred_fallthru
        _
      %p406 = scmp.le.s32.totalorder 1, %s30
      %p407 = scmp.lt.s32.totalorder %s30, 4
      %p408 = pnand %p406, %p407
      %p409 = pneg %p408
      // Predicated region
      $region49: #{tpu_custom_call.1} parent=5 // pred_check
        _
      $region50: #{tpu_custom_call.1} parent=5 // pred_check_branch
        %411 = sbr.rel (%p408) target = $region52
      $region51: #{tpu_custom_call.1} parent=5 // pred_region
        %s412 = ssub.s32 %s30, 1
        %s413 = sand.u32 %s57, 1
        %s414 = scalar_lea.sflag [#allocation7], %s413
        %s415 = sand.u32 %s57, 1
        %s416 = smul.addr %s415, 24
        %s417 = scalar_lea.vmem [#allocation6], %s416
        // Predicated region
        $region53: #{tpu_custom_call.1} parent=51 // pred_check
          %p418 = pneg %p70
        $region54: #{tpu_custom_call.1} parent=51 // pred_check_branch
          %420 = sbr.rel (%p418) target = $region56
        $region55: #{tpu_custom_call.1} parent=51 // pred_region
          %421 = dma.done %s414, 384
        $region56: #{tpu_custom_call.1} parent=51 // pred_fallthru
          _
        %s422 = sand.u32 %s35, 1
        %s423 = scalar_lea.sflag [#allocation10], %s422
        %s424 = sand.u32 %s87, 1
        %s425 = smul.addr %s424, 24
        %s426 = scalar_lea.vmem [#allocation9], %s425
        // Predicated region
        $region57: #{tpu_custom_call.1} parent=51 // pred_check
          %p427 = pneg %p100
        $region58: #{tpu_custom_call.1} parent=51 // pred_check_branch
          %429 = sbr.rel (%p427) target = $region60
        $region59: #{tpu_custom_call.1} parent=51 // pred_region
          %430 = dma.done %s423, 384
        $region60: #{tpu_custom_call.1} parent=51 // pred_fallthru
          _
        // Predicated region
        $region61: #{tpu_custom_call.1} parent=51 // pred_check
          %p431 = pneg %p121
        $region62: #{tpu_custom_call.1} parent=51 // pred_check_branch
          %433 = sbr.rel (%p431) target = $region64
        $region63: #{tpu_custom_call.1} parent=51 // pred_region
          %434 = dma.done [#allocation10], 256
        $region64: #{tpu_custom_call.1} parent=51 // pred_fallthru
          _
        // Predicated region
        $region65: #{tpu_custom_call.1} parent=51 // pred_check
          %p435 = pneg %p142
        $region66: #{tpu_custom_call.1} parent=51 // pred_check_branch
          %437 = sbr.rel (%p435) target = $region68
        $region67: #{tpu_custom_call.1} parent=51 // pred_region
          %438 = dma.done [#allocation13], 256
        $region68: #{tpu_custom_call.1} parent=51 // pred_fallthru
          _
        // Predicated region
        $region69: #{tpu_custom_call.1} parent=51 // pred_check
          %p439 = pneg %p163
        $region70: #{tpu_custom_call.1} parent=51 // pred_check_branch
          %441 = sbr.rel (%p439) target = $region72
        $region71: #{tpu_custom_call.1} parent=51 // pred_region
          %442 = dma.done [#allocation13], 512
        $region72: #{tpu_custom_call.1} parent=51 // pred_fallthru
          _
        // Predicated region
        $region73: #{tpu_custom_call.1} parent=51 // pred_check
          %p443 = pneg %p184
        $region74: #{tpu_custom_call.1} parent=51 // pred_check_branch
          %445 = sbr.rel (%p443) target = $region76
        $region75: #{tpu_custom_call.1} parent=51 // pred_region
          %446 = dma.done [#allocation16], 512
        $region76: #{tpu_custom_call.1} parent=51 // pred_fallthru
          _
        %s447 = sand.u32 %s57, 1
        %s448 = scalar_lea.sflag [#allocation7], %s447
        %s449 = sand.u32 %s57, 1
        %s450 = smul.addr %s449, 24
        %s451 = scalar_lea.vmem [#allocation6], %s450
        %p452 = pneg %p70
        %p453 = pneg %p67
        %s454 = sand.u32 %s35, 1
        %s455 = scalar_lea.sflag [#allocation10], %s454
        %s456 = sand.u32 %s87, 1
        %s457 = smul.addr %s456, 24
        %s458 = scalar_lea.vmem [#allocation9], %s457
        %p459 = pneg %p100
        %p460 = pneg %p97
        %p461 = pneg %p121
        %p462 = pneg %p118
        %p463 = pneg %p142
        %p464 = pneg %p139
        %p465 = pneg %p163
        %p466 = pneg %p160
        %p467 = pneg %p184
        %p468 = pneg %p181
        %p469 = pneg %p205
        %p470 = pneg %p202
        %p471 = pneg %p226
        %p472 = pneg %p223
        %p473 = pneg %p254
        %p474 = pneg %p251
        %s475 = sand.u32 %s241, 1
        %s476 = scalar_lea.sflag [#allocation8], %s475
        %s477 = sand.u32 %s241, 1
        %s478 = smul.addr %s477, 24
        %s479 = scalar_lea.vmem [#allocation17], %s478
        %p480 = pneg %p284
        %p481 = pneg %p281
        %s482 = sand.u32 %s271, 1
        %s483 = scalar_lea.sflag [#allocation19], %s482
        %s484 = sand.u32 %s271, 1
        %s485 = smul.addr %s484, 24
        %s486 = scalar_lea.vmem [#allocation18], %s485
        %s487 = smul.u32 3, %s40
        %s488 = ssub.s32 2, %s40
        %s489 = smul.u32 3, %s488
        %s490 = smul.u32 3, %s40
        %s491 = ssub.s32 2, %s40
        %s492 = smul.u32 3, %s491
        %p493 = scmp.eq.s32.totalorder %s40, 0
        // Predicated region
        $region77: #{tpu_custom_call.1} parent=51 // pred_check
          %p494 = pneg %p493
        $region78: #{tpu_custom_call.1} parent=51 // pred_check_branch
          %496 = sbr.rel (%p494) target = $region80
        $region79: #{tpu_custom_call.1} parent=51 // pred_region
          %vm497 = vcmask 261120
          %498 = vst.msk [vmem:[#allocation4] sm:$0xff] %vm497, 0.0
          %499 = vst.msk [vmem:[#allocation4 + $0x8] sm:$0xff] %vm497, 0.0
          %500 = vst.msk [vmem:[#allocation5] sm:$0xff] %vm497, 0.0
          %501 = vst.msk [vmem:[#allocation5 + $0x8] sm:$0xff] %vm497, 0.0
        $region80: #{tpu_custom_call.1} parent=51 // pred_fallthru
          _
        %v502 = vld [vmem:[%s417] sm:$0xff]
        %v503 = vld [vmem:[%s417 + $0x8] sm:$0xff]
        %v504 = vld [vmem:[%s417 + $0x10] sm:$0xff]
        %v505 = vld [vmem:[#allocation11] sm:$0xff]
        %v506 = vld [vmem:[#allocation11 + $0x8] sm:$0xff]
        %v507 = vld [vmem:[%s6] sm:$0x1]
        %v509 = vlaneseq
        %v510 = vshrl.u32 %v509, 7
        %v511 = vsub.s32 0, %v510
        %v512 = vrot.slane %v507, %v511
        %vm514 = vcmask 130048
        %v516 = vsel %vm514, %v502, 0
        %v519 = vsel %vm514, %v503, 0
        %v522 = vsel %vm514, %v504, 0
        %524 = vmatprep.subr.mxu0 0.0
        %525 = vmatpush1.msra.mxu0 %v505
        %526 = vmatprep.subr.mxu0 0.0
        %527 = vmatpush1.msra.mxu0 %v506
        %528 = vmatprep.subr.mxu0 0.0
        %529 = vmatpush1.msra.mxu0 0.0
        %530 = vmatprep.subr.mxu0 0.0
        %531 = vmatpush1.msra.mxu0 0.0
        %532 = vmatprep.subr.mxu0 0.0
        %533 = vmatpush1.msra.mxu0 0.0
        %534 = vmatprep.subr.mxu0 0.0
        %535 = vmatpush1.msra.mxu0 0.0
        %536 = vmatprep.subr.mxu0 0.0
        %537 = vmatpush1.msra.mxu0 0.0
        %538 = vmatprep.subr.mxu0 0.0
        %539 = vmatpush1.msra.mxu0 0.0
        %540 = vmatprep.subr.mxu0 0.0
        %541 = vmatpush1.msra.mxu0 0.0
        %542 = vmatprep.subr.mxu0 0.0
        %543 = vmatpush1.msra.mxu0 0.0
        %544 = vmatprep.subr.mxu0 0.0
        %545 = vmatpush1.msra.mxu0 0.0
        %546 = vmatprep.subr.mxu0 0.0
        %547 = vmatpush1.msra.mxu0 0.0
        %548 = vmatprep.subr.mxu0 0.0
        %549 = vmatpush1.msra.mxu0 0.0
        %550 = vmatprep.subr.mxu0 0.0
        %551 = vmatpush1.msra.mxu0 0.0
        %552 = vmatprep.subr.mxu0 0.0
        %553 = vmatpush1.msra.mxu0 0.0
        %554 = vmatprep.subr.mxu0 0.0
        %555 = vmatpush1.msra.mxu0 0.0
        %556 = vmatprep.subr.mxu0 0.0
        %557 = vmatpush1.msra.mxu0 0.0
        %558 = vmatprep.subr.mxu0 0.0
        %559 = vmatpush1.msra.mxu0 0.0
        %560 = vmatprep.subr.mxu0 0.0
        %561 = vmatpush1.msra.mxu0 0.0
        %562 = vmatprep.subr.mxu0 0.0
        %563 = vmatpush1.msra.mxu0 0.0
        %564 = vmatprep.subr.mxu0 0.0
        %565 = vmatpush1.msra.mxu0 0.0
        %566 = vmatprep.subr.mxu0 0.0
        %567 = vmatpush1.msra.mxu0 0.0
        %568 = vmatprep.subr.mxu0 0.0
        %569 = vmatpush1.msra.mxu0 0.0
        %570 = vmatprep.subr.mxu0 0.0
        %571 = vmatpush1.msra.mxu0 0.0
        %572 = vmatprep.subr.mxu0 0.0
        %573 = vmatpush1.msra.mxu0 0.0
        %574 = vmatprep.subr.mxu0 0.0
        %575 = vmatpush1.msra.mxu0 0.0
        %576 = vmatprep.subr.mxu0 0.0
        %577 = vmatpush1.msra.mxu0 0.0
        %578 = vmatprep.subr.mxu0 0.0
        %579 = vmatpush1.msra.mxu0 0.0
        %580 = vmatprep.subr.mxu0 0.0
        %581 = vmatpush1.msra.mxu0 0.0
        %582 = vmatprep.subr.mxu0 0.0
        %583 = vmatpush1.msra.mxu0 0.0
        %584 = vmatprep.subr.mxu0 0.0
        %585 = vmatpush1.msra.mxu0 0.0
        %586 = vmatprep.subr.mxu0 0.0
        %587 = vmatpush1.msra.mxu0 0.0
        %588 = vmatprep.mubr.f32.mxu0 0.0
        %589 = vmatmul.mubr.f32.gmra.mrb[0].mxu0 %v516
        %v590 = vpop.f32.mrb[0].mxu0
        %v591 = vadd.f32 %v512, %v590
        %v592 = vpop.f32.mrb[0].mxu0
        %593 = vmatprep.mubr.f32.mxu0 0.0
        %594 = vmatmul.mubr.f32.gmra.mrb[0].mxu0 %v519
        %v595 = vpop.f32.mrb[0].mxu0
        %v596 = vadd.f32 %v512, %v595
        %v597 = vpop.f32.mrb[0].mxu0
        %598 = vmatprep.mubr.f32.mxu0 0.0
        %599 = vmatmul.mubr.f32.gmra.mrb[0].mxu0 %v522
        %v600 = vpop.f32.mrb[0].mxu0
        %v601 = vadd.f32 %v512, %v600
        %v602 = vpop.f32.mrb[0].mxu0
        %603 = vdwg.mxu0
        %604 = vst [vmem:[#allocation2] sm:$0xff] %v591
        %605 = vst [vmem:[#allocation2 + $0x8] sm:$0xff] %v596
        %606 = vst [vmem:[#allocation2 + $0x10] sm:$0xff] %v601
        %v607 = vld [vmem:[%s426] sm:$0xff]
        %v608 = vld [vmem:[%s426 + $0x8] sm:$0xff]
        %v609 = vld [vmem:[%s426 + $0x10] sm:$0xff]
        %v610 = vld [vmem:[#allocation12] sm:$0xff]
        %v611 = vld [vmem:[#allocation12 + $0x8] sm:$0xff]
        %v612 = vld [vmem:[%s7] sm:$0x1]
        %v614 = vlaneseq
        %v615 = vshrl.u32 %v614, 7
        %v616 = vsub.s32 0, %v615
        %v617 = vrot.slane %v612, %v616
        %v620 = vsel %vm514, %v607, 0
        %v623 = vsel %vm514, %v608, 0
        %v626 = vsel %vm514, %v609, 0
        %628 = vmatprep.subr.mxu0 0.0
        %629 = vmatpush1.msra.mxu0 %v610
        %630 = vmatprep.subr.mxu0 0.0
        %631 = vmatpush1.msra.mxu0 %v611
        %632 = vmatprep.subr.mxu0 0.0
        %633 = vmatpush1.msra.mxu0 0.0
        %634 = vmatprep.subr.mxu0 0.0
        %635 = vmatpush1.msra.mxu0 0.0
        %636 = vmatprep.subr.mxu0 0.0
        %637 = vmatpush1.msra.mxu0 0.0
        %638 = vmatprep.subr.mxu0 0.0
        %639 = vmatpush1.msra.mxu0 0.0
        %640 = vmatprep.subr.mxu0 0.0
        %641 = vmatpush1.msra.mxu0 0.0
        %642 = vmatprep.subr.mxu0 0.0
        %643 = vmatpush1.msra.mxu0 0.0
        %644 = vmatprep.subr.mxu0 0.0
        %645 = vmatpush1.msra.mxu0 0.0
        %646 = vmatprep.subr.mxu0 0.0
        %647 = vmatpush1.msra.mxu0 0.0
        %648 = vmatprep.subr.mxu0 0.0
        %649 = vmatpush1.msra.mxu0 0.0
        %650 = vmatprep.subr.mxu0 0.0
        %651 = vmatpush1.msra.mxu0 0.0
        %652 = vmatprep.subr.mxu0 0.0
        %653 = vmatpush1.msra.mxu0 0.0
        %654 = vmatprep.subr.mxu0 0.0
        %655 = vmatpush1.msra.mxu0 0.0
        %656 = vmatprep.subr.mxu0 0.0
        %657 = vmatpush1.msra.mxu0 0.0
        %658 = vmatprep.subr.mxu0 0.0
        %659 = vmatpush1.msra.mxu0 0.0
        %660 = vmatprep.subr.mxu0 0.0
        %661 = vmatpush1.msra.mxu0 0.0
        %662 = vmatprep.subr.mxu0 0.0
        %663 = vmatpush1.msra.mxu0 0.0
        %664 = vmatprep.subr.mxu0 0.0
        %665 = vmatpush1.msra.mxu0 0.0
        %666 = vmatprep.subr.mxu0 0.0
        %667 = vmatpush1.msra.mxu0 0.0
        %668 = vmatprep.subr.mxu0 0.0
        %669 = vmatpush1.msra.mxu0 0.0
        %670 = vmatprep.subr.mxu0 0.0
        %671 = vmatpush1.msra.mxu0 0.0
        %672 = vmatprep.subr.mxu0 0.0
        %673 = vmatpush1.msra.mxu0 0.0
        %674 = vmatprep.subr.mxu0 0.0
        %675 = vmatpush1.msra.mxu0 0.0
        %676 = vmatprep.subr.mxu0 0.0
        %677 = vmatpush1.msra.mxu0 0.0
        %678 = vmatprep.subr.mxu0 0.0
        %679 = vmatpush1.msra.mxu0 0.0
        %680 = vmatprep.subr.mxu0 0.0
        %681 = vmatpush1.msra.mxu0 0.0
        %682 = vmatprep.subr.mxu0 0.0
        %683 = vmatpush1.msra.mxu0 0.0
        %684 = vmatprep.subr.mxu0 0.0
        %685 = vmatpush1.msra.mxu0 0.0
        %686 = vmatprep.subr.mxu0 0.0
        %687 = vmatpush1.msra.mxu0 0.0
        %688 = vmatprep.subr.mxu0 0.0
        %689 = vmatpush1.msra.mxu0 0.0
        %690 = vmatprep.subr.mxu0 0.0
        %691 = vmatpush1.msra.mxu0 0.0
        %692 = vmatprep.mubr.f32.mxu0 0.0
        %693 = vmatmul.mubr.f32.gmra.mrb[0].mxu0 %v620
        %v694 = vpop.f32.mrb[0].mxu0
        %v695 = vadd.f32 %v617, %v694
        %v696 = vpop.f32.mrb[0].mxu0
        %697 = vmatprep.mubr.f32.mxu0 0.0
        %698 = vmatmul.mubr.f32.gmra.mrb[0].mxu0 %v623
        %v699 = vpop.f32.mrb[0].mxu0
        %v700 = vadd.f32 %v617, %v699
        %v701 = vpop.f32.mrb[0].mxu0
        %702 = vmatprep.mubr.f32.mxu0 0.0
        %703 = vmatmul.mubr.f32.gmra.mrb[0].mxu0 %v626
        %v704 = vpop.f32.mrb[0].mxu0
        %v705 = vadd.f32 %v617, %v704
        %v706 = vpop.f32.mrb[0].mxu0
        %707 = vdwg.mxu0
        %708 = vst [vmem:[#allocation3] sm:$0xff] %v695
        %709 = vst [vmem:[#allocation3 + $0x8] sm:$0xff] %v700
        %710 = vst [vmem:[#allocation3 + $0x10] sm:$0xff] %v705
        %v711 = vld [vmem:[#allocation4] sm:$0xff]
        %s712 = scalar_lea.vmem [#allocation4], 8
        %v713 = vld [vmem:[%s712] sm:$0xff]
        %v714 = vld [vmem:[#allocation5] sm:$0xff]
        %s715 = scalar_lea.vmem [#allocation5], 8
        %v716 = vld [vmem:[%s715] sm:$0xff]
        %v717 = vld [vmem:[#allocation14] sm:$0xff]
        %v718 = vld [vmem:[#allocation14 + $0x8] sm:$0xff]
        %v719 = vld [vmem:[#allocation14 + $0x10] sm:$0xff]
        %v720 = vld [vmem:[#allocation14 + $0x18] sm:$0xff]
        %vm721 = vcmask 261120
        %v723 = vsel %vm721, %v711, 0
        %725 = vmatprep.subr.mxu0 0.0
        %726 = vmatpush1.msra.mxu0 %v717
        %727 = vmatprep.subr.mxu0 0.0
        %728 = vmatpush1.msra.mxu0 %v718
        %729 = vmatprep.subr.mxu0 0.0
        %730 = vmatpush1.msra.mxu0 %v719
        %731 = vmatprep.subr.mxu0 0.0
        %732 = vmatpush1.msra.mxu0 %v720
        %733 = vmatprep.subr.mxu0 0.0
        %734 = vmatpush1.msra.mxu0 0.0
        %735 = vmatprep.subr.mxu0 0.0
        %736 = vmatpush1.msra.mxu0 0.0
        %737 = vmatprep.subr.mxu0 0.0
        %738 = vmatpush1.msra.mxu0 0.0
        %739 = vmatprep.subr.mxu0 0.0
        %740 = vmatpush1.msra.mxu0 0.0
        %741 = vmatprep.subr.mxu0 0.0
        %742 = vmatpush1.msra.mxu0 0.0
        %743 = vmatprep.subr.mxu0 0.0
        %744 = vmatpush1.msra.mxu0 0.0
        %745 = vmatprep.subr.mxu0 0.0
        %746 = vmatpush1.msra.mxu0 0.0
        %747 = vmatprep.subr.mxu0 0.0
        %748 = vmatpush1.msra.mxu0 0.0
        %749 = vmatprep.subr.mxu0 0.0
        %750 = vmatpush1.msra.mxu0 0.0
        %751 = vmatprep.subr.mxu0 0.0
        %752 = vmatpush1.msra.mxu0 0.0
        %753 = vmatprep.subr.mxu0 0.0
        %754 = vmatpush1.msra.mxu0 0.0
        %755 = vmatprep.subr.mxu0 0.0
        %756 = vmatpush1.msra.mxu0 0.0
        %757 = vmatprep.subr.mxu0 0.0
        %758 = vmatpush1.msra.mxu0 0.0
        %759 = vmatprep.subr.mxu0 0.0
        %760 = vmatpush1.msra.mxu0 0.0
        %761 = vmatprep.subr.mxu0 0.0
        %762 = vmatpush1.msra.mxu0 0.0
        %763 = vmatprep.subr.mxu0 0.0
        %764 = vmatpush1.msra.mxu0 0.0
        %765 = vmatprep.subr.mxu0 0.0
        %766 = vmatpush1.msra.mxu0 0.0
        %767 = vmatprep.subr.mxu0 0.0
        %768 = vmatpush1.msra.mxu0 0.0
        %769 = vmatprep.subr.mxu0 0.0
        %770 = vmatpush1.msra.mxu0 0.0
        %771 = vmatprep.subr.mxu0 0.0
        %772 = vmatpush1.msra.mxu0 0.0
        %773 = vmatprep.subr.mxu0 0.0
        %774 = vmatpush1.msra.mxu0 0.0
        %775 = vmatprep.subr.mxu0 0.0
        %776 = vmatpush1.msra.mxu0 0.0
        %777 = vmatprep.subr.mxu0 0.0
        %778 = vmatpush1.msra.mxu0 0.0
        %779 = vmatprep.subr.mxu0 0.0
        %780 = vmatpush1.msra.mxu0 0.0
        %781 = vmatprep.subr.mxu0 0.0
        %782 = vmatpush1.msra.mxu0 0.0
        %783 = vmatprep.subr.mxu0 0.0
        %784 = vmatpush1.msra.mxu0 0.0
        %785 = vmatprep.subr.mxu0 0.0
        %786 = vmatpush1.msra.mxu0 0.0
        %787 = vmatprep.subr.mxu0 0.0
        %788 = vmatpush1.msra.mxu0 0.0
        %789 = vmatprep.mubr.f32.mxu0 0.0
        %790 = vmatmul.mubr.f32.gmra.mrb[0].mxu0 %v723
        %v791 = vpop.f32.mrb[0].mxu0
        %v792 = vadd.f32 0.0, %v791
        %v793 = vpop.f32.mrb[0].mxu0
        %794 = vdwg.mxu0
        %v795 = vld [vmem:[#allocation15] sm:$0xff]
        %v796 = vld [vmem:[#allocation15 + $0x8] sm:$0xff]
        %v797 = vld [vmem:[#allocation15 + $0x10] sm:$0xff]
        %v798 = vld [vmem:[#allocation15 + $0x18] sm:$0xff]
        %v800 = vsel %vm721, %v713, 0
        %802 = vmatprep.subr.mxu0 0.0
        %803 = vmatpush1.msra.mxu0 %v795
        %804 = vmatprep.subr.mxu0 0.0
        %805 = vmatpush1.msra.mxu0 %v796
        %806 = vmatprep.subr.mxu0 0.0
        %807 = vmatpush1.msra.mxu0 %v797
        %808 = vmatprep.subr.mxu0 0.0
        %809 = vmatpush1.msra.mxu0 %v798
        %810 = vmatprep.subr.mxu0 0.0
        %811 = vmatpush1.msra.mxu0 0.0
        %812 = vmatprep.subr.mxu0 0.0
        %813 = vmatpush1.msra.mxu0 0.0
        %814 = vmatprep.subr.mxu0 0.0
        %815 = vmatpush1.msra.mxu0 0.0
        %816 = vmatprep.subr.mxu0 0.0
        %817 = vmatpush1.msra.mxu0 0.0
        %818 = vmatprep.subr.mxu0 0.0
        %819 = vmatpush1.msra.mxu0 0.0
        %820 = vmatprep.subr.mxu0 0.0
        %821 = vmatpush1.msra.mxu0 0.0
        %822 = vmatprep.subr.mxu0 0.0
        %823 = vmatpush1.msra.mxu0 0.0
        %824 = vmatprep.subr.mxu0 0.0
        %825 = vmatpush1.msra.mxu0 0.0
        %826 = vmatprep.subr.mxu0 0.0
        %827 = vmatpush1.msra.mxu0 0.0
        %828 = vmatprep.subr.mxu0 0.0
        %829 = vmatpush1.msra.mxu0 0.0
        %830 = vmatprep.subr.mxu0 0.0
        %831 = vmatpush1.msra.mxu0 0.0
        %832 = vmatprep.subr.mxu0 0.0
        %833 = vmatpush1.msra.mxu0 0.0
        %834 = vmatprep.subr.mxu0 0.0
        %835 = vmatpush1.msra.mxu0 0.0
        %836 = vmatprep.subr.mxu0 0.0
        %837 = vmatpush1.msra.mxu0 0.0
        %838 = vmatprep.subr.mxu0 0.0
        %839 = vmatpush1.msra.mxu0 0.0
        %840 = vmatprep.subr.mxu0 0.0
        %841 = vmatpush1.msra.mxu0 0.0
        %842 = vmatprep.subr.mxu0 0.0
        %843 = vmatpush1.msra.mxu0 0.0
        %844 = vmatprep.subr.mxu0 0.0
        %845 = vmatpush1.msra.mxu0 0.0
        %846 = vmatprep.subr.mxu0 0.0
        %847 = vmatpush1.msra.mxu0 0.0
        %848 = vmatprep.subr.mxu0 0.0
        %849 = vmatpush1.msra.mxu0 0.0
        %850 = vmatprep.subr.mxu0 0.0
        %851 = vmatpush1.msra.mxu0 0.0
        %852 = vmatprep.subr.mxu0 0.0
        %853 = vmatpush1.msra.mxu0 0.0
        %854 = vmatprep.subr.mxu0 0.0
        %855 = vmatpush1.msra.mxu0 0.0
        %856 = vmatprep.subr.mxu0 0.0
        %857 = vmatpush1.msra.mxu0 0.0
        %858 = vmatprep.subr.mxu0 0.0
        %859 = vmatpush1.msra.mxu0 0.0
        %860 = vmatprep.subr.mxu0 0.0
        %861 = vmatpush1.msra.mxu0 0.0
        %862 = vmatprep.subr.mxu0 0.0
        %863 = vmatpush1.msra.mxu0 0.0
        %864 = vmatprep.subr.mxu0 0.0
        %865 = vmatpush1.msra.mxu0 0.0
        %866 = vmatprep.mubr.f32.mxu0 0.0
        %867 = vmatmul.mubr.f32.gmra.mrb[0].mxu0 %v800
        %v868 = vpop.f32.mrb[0].mxu0
        %v869 = vadd.f32 0.0, %v868
        %v870 = vpop.f32.mrb[0].mxu0
        %871 = vdwg.mxu0
        %v872 = vld [vmem:[#allocation2] sm:$0xff]
        %v873 = vadd.f32 %v872, %v792
        %s874 = scalar_lea.vmem [#allocation3], 16
        %v875 = vld [vmem:[%s874] sm:$0xff]
        %v876 = vadd.f32 %v875, %v869
        %v877 = vxor.u32 %v873, 2147483648
        %v878 = vmul.f32 %v877, 1.442695
        %v879 = vpow.pop %v878
        %v880 = vadd.f32 %v879, 1.0
        %v881 = vrcp.pop %v880
        %v882 = vmul.f32 1.0, %v881
        %v883 = vtanh.pop %v873
        %v884 = vxor.u32 %v876, 2147483648
        %v885 = vmul.f32 %v884, 1.442695
        %v886 = vpow.pop %v885
        %v887 = vadd.f32 %v886, 1.0
        %v888 = vrcp.pop %v887
        %v889 = vmul.f32 1.0, %v888
        %v890 = vtanh.pop %v876
        %892 = vrot.lane.b32.xlu0 %v714, 32
        %v893 = vpop.permute.xlu0 %892
        %v895 = vmul.f32 %v882, %v893
        %897 = vrot.lane.b32.xlu0 %v883, 32
        %v898 = vpop.permute.xlu0 %897
        %v900 = vmul.f32 %v882, %v898
        %902 = vrot.lane.b32.xlu0 %v900, 32
        %v903 = vpop.permute.xlu0 %902
        %v905 = vadd.f32 %v895, %v903
        %907 = vrot.lane.b32.xlu0 %v716, 32
        %v908 = vpop.permute.xlu0 %907
        %v910 = vmul.f32 %v889, %v908
        %912 = vrot.lane.b32.xlu0 %v890, 32
        %v913 = vpop.permute.xlu0 %912
        %v915 = vmul.f32 %v889, %v913
        %917 = vrot.lane.b32.xlu0 %v915, 32
        %v918 = vpop.permute.xlu0 %917
        %v920 = vadd.f32 %v910, %v918
        %v921 = vtanh.pop %v905
        %923 = vrot.lane.b32.xlu0 %v921, 32
        %v924 = vpop.permute.xlu0 %923
        %v926 = vmul.f32 %v882, %v924
        %v927 = vtanh.pop %v920
        %929 = vrot.lane.b32.xlu0 %v927, 32
        %v930 = vpop.permute.xlu0 %929
        %v932 = vmul.f32 %v889, %v930
        %s933 = smul.u32 %s40, 3
        %p934 = scmp.ge.s32.totalorder %s933, 1
        %s935 = scalar_select %p934, 1, 0
        %s936 = scvt.s32.f32 %s935
        %v937 = vstv %s936
        %v938 = vmul.f32 %v920, %v937
        %v939 = vmul.f32 %v932, %v937
        %941 = vrot.lane.b32.xlu0 %v926, 64
        %v942 = vpop.permute.xlu0 %941
        %944 = vst.msk [vmem:[%s479] sm:$0xff] %vm721, %v942
        %946 = vrot.lane.b32.xlu0 %v939, 64
        %v947 = vpop.permute.xlu0 %946
        %s949 = scalar_lea.vmem %s486, 16 [#allocation18]
        %950 = vst.msk [vmem:[%s949] sm:$0xff] %vm721, %v947
        %v951 = vld [vmem:[#allocation14] sm:$0xff]
        %v952 = vld [vmem:[#allocation14 + $0x8] sm:$0xff]
        %v953 = vld [vmem:[#allocation14 + $0x10] sm:$0xff]
        %v954 = vld [vmem:[#allocation14 + $0x18] sm:$0xff]
        %v955 = vsel %vm721, %v942, 0
        %957 = vmatprep.subr.mxu0 0.0
        %958 = vmatpush1.msra.mxu0 %v951
        %959 = vmatprep.subr.mxu0 0.0
        %960 = vmatpush1.msra.mxu0 %v952
        %961 = vmatprep.subr.mxu0 0.0
        %962 = vmatpush1.msra.mxu0 %v953
        %963 = vmatprep.subr.mxu0 0.0
        %964 = vmatpush1.msra.mxu0 %v954
        %965 = vmatprep.subr.mxu0 0.0
        %966 = vmatpush1.msra.mxu0 0.0
        %967 = vmatprep.subr.mxu0 0.0
        %968 = vmatpush1.msra.mxu0 0.0
        %969 = vmatprep.subr.mxu0 0.0
        %970 = vmatpush1.msra.mxu0 0.0
        %971 = vmatprep.subr.mxu0 0.0
        %972 = vmatpush1.msra.mxu0 0.0
        %973 = vmatprep.subr.mxu0 0.0
        %974 = vmatpush1.msra.mxu0 0.0
        %975 = vmatprep.subr.mxu0 0.0
        %976 = vmatpush1.msra.mxu0 0.0
        %977 = vmatprep.subr.mxu0 0.0
        %978 = vmatpush1.msra.mxu0 0.0
        %979 = vmatprep.subr.mxu0 0.0
        %980 = vmatpush1.msra.mxu0 0.0
        %981 = vmatprep.subr.mxu0 0.0
        %982 = vmatpush1.msra.mxu0 0.0
        %983 = vmatprep.subr.mxu0 0.0
        %984 = vmatpush1.msra.mxu0 0.0
        %985 = vmatprep.subr.mxu0 0.0
        %986 = vmatpush1.msra.mxu0 0.0
        %987 = vmatprep.subr.mxu0 0.0
        %988 = vmatpush1.msra.mxu0 0.0
        %989 = vmatprep.subr.mxu0 0.0
        %990 = vmatpush1.msra.mxu0 0.0
        %991 = vmatprep.subr.mxu0 0.0
        %992 = vmatpush1.msra.mxu0 0.0
        %993 = vmatprep.subr.mxu0 0.0
        %994 = vmatpush1.msra.mxu0 0.0
        %995 = vmatprep.subr.mxu0 0.0
        %996 = vmatpush1.msra.mxu0 0.0
        %997 = vmatprep.subr.mxu0 0.0
        %998 = vmatpush1.msra.mxu0 0.0
        %999 = vmatprep.subr.mxu0 0.0
        %1000 = vmatpush1.msra.mxu0 0.0
        %1001 = vmatprep.subr.mxu0 0.0
        %1002 = vmatpush1.msra.mxu0 0.0
        %1003 = vmatprep.subr.mxu0 0.0
        %1004 = vmatpush1.msra.mxu0 0.0
        %1005 = vmatprep.subr.mxu0 0.0
        %1006 = vmatpush1.msra.mxu0 0.0
        %1007 = vmatprep.subr.mxu0 0.0
        %1008 = vmatpush1.msra.mxu0 0.0
        %1009 = vmatprep.subr.mxu0 0.0
        %1010 = vmatpush1.msra.mxu0 0.0
        %1011 = vmatprep.subr.mxu0 0.0
        %1012 = vmatpush1.msra.mxu0 0.0
        %1013 = vmatprep.subr.mxu0 0.0
        %1014 = vmatpush1.msra.mxu0 0.0
        %1015 = vmatprep.subr.mxu0 0.0
        %1016 = vmatpush1.msra.mxu0 0.0
        %1017 = vmatprep.subr.mxu0 0.0
        %1018 = vmatpush1.msra.mxu0 0.0
        %1019 = vmatprep.subr.mxu0 0.0
        %1020 = vmatpush1.msra.mxu0 0.0
        %1021 = vmatprep.mubr.f32.mxu0 0.0
        %1022 = vmatmul.mubr.f32.gmra.mrb[0].mxu0 %v955
        %v1023 = vpop.f32.mrb[0].mxu0
        %v1024 = vadd.f32 0.0, %v1023
        %v1025 = vpop.f32.mrb[0].mxu0
        %1026 = vdwg.mxu0
        %v1027 = vld [vmem:[#allocation15] sm:$0xff]
        %v1028 = vld [vmem:[#allocation15 + $0x8] sm:$0xff]
        %v1029 = vld [vmem:[#allocation15 + $0x10] sm:$0xff]
        %v1030 = vld [vmem:[#allocation15 + $0x18] sm:$0xff]
        %v1031 = vsel %vm721, %v947, 0
        %1033 = vmatprep.subr.mxu0 0.0
        %1034 = vmatpush1.msra.mxu0 %v1027
        %1035 = vmatprep.subr.mxu0 0.0
        %1036 = vmatpush1.msra.mxu0 %v1028
        %1037 = vmatprep.subr.mxu0 0.0
        %1038 = vmatpush1.msra.mxu0 %v1029
        %1039 = vmatprep.subr.mxu0 0.0
        %1040 = vmatpush1.msra.mxu0 %v1030
        %1041 = vmatprep.subr.mxu0 0.0
        %1042 = vmatpush1.msra.mxu0 0.0
        %1043 = vmatprep.subr.mxu0 0.0
        %1044 = vmatpush1.msra.mxu0 0.0
        %1045 = vmatprep.subr.mxu0 0.0
        %1046 = vmatpush1.msra.mxu0 0.0
        %1047 = vmatprep.subr.mxu0 0.0
        %1048 = vmatpush1.msra.mxu0 0.0
        %1049 = vmatprep.subr.mxu0 0.0
        %1050 = vmatpush1.msra.mxu0 0.0
        %1051 = vmatprep.subr.mxu0 0.0
        %1052 = vmatpush1.msra.mxu0 0.0
        %1053 = vmatprep.subr.mxu0 0.0
        %1054 = vmatpush1.msra.mxu0 0.0
        %1055 = vmatprep.subr.mxu0 0.0
        %1056 = vmatpush1.msra.mxu0 0.0
        %1057 = vmatprep.subr.mxu0 0.0
        %1058 = vmatpush1.msra.mxu0 0.0
        %1059 = vmatprep.subr.mxu0 0.0
        %1060 = vmatpush1.msra.mxu0 0.0
        %1061 = vmatprep.subr.mxu0 0.0
        %1062 = vmatpush1.msra.mxu0 0.0
        %1063 = vmatprep.subr.mxu0 0.0
        %1064 = vmatpush1.msra.mxu0 0.0
        %1065 = vmatprep.subr.mxu0 0.0
        %1066 = vmatpush1.msra.mxu0 0.0
        %1067 = vmatprep.subr.mxu0 0.0
        %1068 = vmatpush1.msra.mxu0 0.0
        %1069 = vmatprep.subr.mxu0 0.0
        %1070 = vmatpush1.msra.mxu0 0.0
        %1071 = vmatprep.subr.mxu0 0.0
        %1072 = vmatpush1.msra.mxu0 0.0
        %1073 = vmatprep.subr.mxu0 0.0
        %1074 = vmatpush1.msra.mxu0 0.0
        %1075 = vmatprep.subr.mxu0 0.0
        %1076 = vmatpush1.msra.mxu0 0.0
        %1077 = vmatprep.subr.mxu0 0.0
        %1078 = vmatpush1.msra.mxu0 0.0
        %1079 = vmatprep.subr.mxu0 0.0
        %1080 = vmatpush1.msra.mxu0 0.0
        %1081 = vmatprep.subr.mxu0 0.0
        %1082 = vmatpush1.msra.mxu0 0.0
        %1083 = vmatprep.subr.mxu0 0.0
        %1084 = vmatpush1.msra.mxu0 0.0
        %1085 = vmatprep.subr.mxu0 0.0
        %1086 = vmatpush1.msra.mxu0 0.0
        %1087 = vmatprep.subr.mxu0 0.0
        %1088 = vmatpush1.msra.mxu0 0.0
        %1089 = vmatprep.subr.mxu0 0.0
        %1090 = vmatpush1.msra.mxu0 0.0
        %1091 = vmatprep.subr.mxu0 0.0
        %1092 = vmatpush1.msra.mxu0 0.0
        %1093 = vmatprep.subr.mxu0 0.0
        %1094 = vmatpush1.msra.mxu0 0.0
        %1095 = vmatprep.subr.mxu0 0.0
        %1096 = vmatpush1.msra.mxu0 0.0
        %1097 = vmatprep.mubr.f32.mxu0 0.0
        %1098 = vmatmul.mubr.f32.gmra.mrb[0].mxu0 %v1031
        %v1099 = vpop.f32.mrb[0].mxu0
        %v1100 = vadd.f32 0.0, %v1099
        %v1101 = vpop.f32.mrb[0].mxu0
        %1102 = vdwg.mxu0
        %s1103 = scalar_lea.vmem [#allocation2], 8
        %v1104 = vld [vmem:[%s1103] sm:$0xff]
        %v1105 = vadd.f32 %v1104, %v1024
        %s1106 = scalar_lea.vmem [#allocation3], 8
        %v1107 = vld [vmem:[%s1106] sm:$0xff]
        %v1108 = vadd.f32 %v1107, %v1100
        %v1109 = vxor.u32 %v1105, 2147483648
        %v1110 = vmul.f32 %v1109, 1.442695
        %v1111 = vpow.pop %v1110
        %v1112 = vadd.f32 %v1111, 1.0
        %v1113 = vrcp.pop %v1112
        %v1114 = vmul.f32 1.0, %v1113
        %v1115 = vtanh.pop %v1105
        %v1116 = vxor.u32 %v1108, 2147483648
        %v1117 = vmul.f32 %v1116, 1.442695
        %v1118 = vpow.pop %v1117
        %v1119 = vadd.f32 %v1118, 1.0
        %v1120 = vrcp.pop %v1119
        %v1121 = vmul.f32 1.0, %v1120
        %v1122 = vtanh.pop %v1108
        %v1123 = vmul.f32 %v1114, %v905
        %1125 = vrot.lane.b32.xlu0 %v1115, 32
        %v1126 = vpop.permute.xlu0 %1125
        %v1128 = vmul.f32 %v1114, %v1126
        %1130 = vrot.lane.b32.xlu0 %v1128, 32
        %v1131 = vpop.permute.xlu0 %1130
        %v1133 = vadd.f32 %v1123, %v1131
        %v1134 = vmul.f32 %v1121, %v938
        %1136 = vrot.lane.b32.xlu0 %v1122, 32
        %v1137 = vpop.permute.xlu0 %1136
        %v1139 = vmul.f32 %v1121, %v1137
        %1141 = vrot.lane.b32.xlu0 %v1139, 32
        %v1142 = vpop.permute.xlu0 %1141
        %v1144 = vadd.f32 %v1134, %v1142
        %v1145 = vtanh.pop %v1133
        %1147 = vrot.lane.b32.xlu0 %v1145, 32
        %v1148 = vpop.permute.xlu0 %1147
        %v1150 = vmul.f32 %v1114, %v1148
        %v1151 = vtanh.pop %v1144
        %1153 = vrot.lane.b32.xlu0 %v1151, 32
        %v1154 = vpop.permute.xlu0 %1153
        %v1156 = vmul.f32 %v1121, %v1154
        %s1157 = sadd.s32 %s933, 1
        %p1158 = scmp.ge.s32.totalorder %s1157, 1
        %s1159 = scalar_select %p1158, 1, 0
        %s1160 = scvt.s32.f32 %s1159
        %v1161 = vstv %s1160
        %v1162 = vmul.f32 %v1144, %v1161
        %v1163 = vmul.f32 %v1156, %v1161
        %1165 = vrot.lane.b32.xlu0 %v1150, 64
        %v1166 = vpop.permute.xlu0 %1165
        %s1168 = scalar_lea.vmem %s479, 8 [#allocation17]
        %1169 = vst.msk [vmem:[%s1168] sm:$0xff] %vm721, %v1166
        %1171 = vrot.lane.b32.xlu0 %v1163, 64
        %v1172 = vpop.permute.xlu0 %1171
        %s1174 = scalar_lea.vmem %s486, 8 [#allocation18]
        %1175 = vst.msk [vmem:[%s1174] sm:$0xff] %vm721, %v1172
        %v1176 = vld [vmem:[#allocation14] sm:$0xff]
        %v1177 = vld [vmem:[#allocation14 + $0x8] sm:$0xff]
        %v1178 = vld [vmem:[#allocation14 + $0x10] sm:$0xff]
        %v1179 = vld [vmem:[#allocation14 + $0x18] sm:$0xff]
        %v1180 = vsel %vm721, %v1166, 0
        %1182 = vmatprep.subr.mxu0 0.0
        %1183 = vmatpush1.msra.mxu0 %v1176
        %1184 = vmatprep.subr.mxu0 0.0
        %1185 = vmatpush1.msra.mxu0 %v1177
        %1186 = vmatprep.subr.mxu0 0.0
        %1187 = vmatpush1.msra.mxu0 %v1178
        %1188 = vmatprep.subr.mxu0 0.0
        %1189 = vmatpush1.msra.mxu0 %v1179
        %1190 = vmatprep.subr.mxu0 0.0
        %1191 = vmatpush1.msra.mxu0 0.0
        %1192 = vmatprep.subr.mxu0 0.0
        %1193 = vmatpush1.msra.mxu0 0.0
        %1194 = vmatprep.subr.mxu0 0.0
        %1195 = vmatpush1.msra.mxu0 0.0
        %1196 = vmatprep.subr.mxu0 0.0
        %1197 = vmatpush1.msra.mxu0 0.0
        %1198 = vmatprep.subr.mxu0 0.0
        %1199 = vmatpush1.msra.mxu0 0.0
        %1200 = vmatprep.subr.mxu0 0.0
        %1201 = vmatpush1.msra.mxu0 0.0
        %1202 = vmatprep.subr.mxu0 0.0
        %1203 = vmatpush1.msra.mxu0 0.0
        %1204 = vmatprep.subr.mxu0 0.0
        %1205 = vmatpush1.msra.mxu0 0.0
        %1206 = vmatprep.subr.mxu0 0.0
        %1207 = vmatpush1.msra.mxu0 0.0
        %1208 = vmatprep.subr.mxu0 0.0
        %1209 = vmatpush1.msra.mxu0 0.0
        %1210 = vmatprep.subr.mxu0 0.0
        %1211 = vmatpush1.msra.mxu0 0.0
        %1212 = vmatprep.subr.mxu0 0.0
        %1213 = vmatpush1.msra.mxu0 0.0
        %1214 = vmatprep.subr.mxu0 0.0
        %1215 = vmatpush1.msra.mxu0 0.0
        %1216 = vmatprep.subr.mxu0 0.0
        %1217 = vmatpush1.msra.mxu0 0.0
        %1218 = vmatprep.subr.mxu0 0.0
        %1219 = vmatpush1.msra.mxu0 0.0
        %1220 = vmatprep.subr.mxu0 0.0
        %1221 = vmatpush1.msra.mxu0 0.0
        %1222 = vmatprep.subr.mxu0 0.0
        %1223 = vmatpush1.msra.mxu0 0.0
        %1224 = vmatprep.subr.mxu0 0.0
        %1225 = vmatpush1.msra.mxu0 0.0
        %1226 = vmatprep.subr.mxu0 0.0
        %1227 = vmatpush1.msra.mxu0 0.0
        %1228 = vmatprep.subr.mxu0 0.0
        %1229 = vmatpush1.msra.mxu0 0.0
        %1230 = vmatprep.subr.mxu0 0.0
        %1231 = vmatpush1.msra.mxu0 0.0
        %1232 = vmatprep.subr.mxu0 0.0
        %1233 = vmatpush1.msra.mxu0 0.0
        %1234 = vmatprep.subr.mxu0 0.0
        %1235 = vmatpush1.msra.mxu0 0.0
        %1236 = vmatprep.subr.mxu0 0.0
        %1237 = vmatpush1.msra.mxu0 0.0
        %1238 = vmatprep.subr.mxu0 0.0
        %1239 = vmatpush1.msra.mxu0 0.0
        %1240 = vmatprep.subr.mxu0 0.0
        %1241 = vmatpush1.msra.mxu0 0.0
        %1242 = vmatprep.subr.mxu0 0.0
        %1243 = vmatpush1.msra.mxu0 0.0
        %1244 = vmatprep.subr.mxu0 0.0
        %1245 = vmatpush1.msra.mxu0 0.0
        %1246 = vmatprep.mubr.f32.mxu0 0.0
        %1247 = vmatmul.mubr.f32.gmra.mrb[0].mxu0 %v1180
        %v1248 = vpop.f32.mrb[0].mxu0
        %v1249 = vadd.f32 0.0, %v1248
        %v1250 = vpop.f32.mrb[0].mxu0
        %1251 = vdwg.mxu0
        %v1252 = vld [vmem:[#allocation15] sm:$0xff]
        %v1253 = vld [vmem:[#allocation15 + $0x8] sm:$0xff]
        %v1254 = vld [vmem:[#allocation15 + $0x10] sm:$0xff]
        %v1255 = vld [vmem:[#allocation15 + $0x18] sm:$0xff]
        %v1256 = vsel %vm721, %v1172, 0
        %1258 = vmatprep.subr.mxu0 0.0
        %1259 = vmatpush1.msra.mxu0 %v1252
        %1260 = vmatprep.subr.mxu0 0.0
        %1261 = vmatpush1.msra.mxu0 %v1253
        %1262 = vmatprep.subr.mxu0 0.0
        %1263 = vmatpush1.msra.mxu0 %v1254
        %1264 = vmatprep.subr.mxu0 0.0
        %1265 = vmatpush1.msra.mxu0 %v1255
        %1266 = vmatprep.subr.mxu0 0.0
        %1267 = vmatpush1.msra.mxu0 0.0
        %1268 = vmatprep.subr.mxu0 0.0
        %1269 = vmatpush1.msra.mxu0 0.0
        %1270 = vmatprep.subr.mxu0 0.0
        %1271 = vmatpush1.msra.mxu0 0.0
        %1272 = vmatprep.subr.mxu0 0.0
        %1273 = vmatpush1.msra.mxu0 0.0
        %1274 = vmatprep.subr.mxu0 0.0
        %1275 = vmatpush1.msra.mxu0 0.0
        %1276 = vmatprep.subr.mxu0 0.0
        %1277 = vmatpush1.msra.mxu0 0.0
        %1278 = vmatprep.subr.mxu0 0.0
        %1279 = vmatpush1.msra.mxu0 0.0
        %1280 = vmatprep.subr.mxu0 0.0
        %1281 = vmatpush1.msra.mxu0 0.0
        %1282 = vmatprep.subr.mxu0 0.0
        %1283 = vmatpush1.msra.mxu0 0.0
        %1284 = vmatprep.subr.mxu0 0.0
        %1285 = vmatpush1.msra.mxu0 0.0
        %1286 = vmatprep.subr.mxu0 0.0
        %1287 = vmatpush1.msra.mxu0 0.0
        %1288 = vmatprep.subr.mxu0 0.0
        %1289 = vmatpush1.msra.mxu0 0.0
        %1290 = vmatprep.subr.mxu0 0.0
        %1291 = vmatpush1.msra.mxu0 0.0
        %1292 = vmatprep.subr.mxu0 0.0
        %1293 = vmatpush1.msra.mxu0 0.0
        %1294 = vmatprep.subr.mxu0 0.0
        %1295 = vmatpush1.msra.mxu0 0.0
        %1296 = vmatprep.subr.mxu0 0.0
        %1297 = vmatpush1.msra.mxu0 0.0
        %1298 = vmatprep.subr.mxu0 0.0
        %1299 = vmatpush1.msra.mxu0 0.0
        %1300 = vmatprep.subr.mxu0 0.0
        %1301 = vmatpush1.msra.mxu0 0.0
        %1302 = vmatprep.subr.mxu0 0.0
        %1303 = vmatpush1.msra.mxu0 0.0
        %1304 = vmatprep.subr.mxu0 0.0
        %1305 = vmatpush1.msra.mxu0 0.0
        %1306 = vmatprep.subr.mxu0 0.0
        %1307 = vmatpush1.msra.mxu0 0.0
        %1308 = vmatprep.subr.mxu0 0.0
        %1309 = vmatpush1.msra.mxu0 0.0
        %1310 = vmatprep.subr.mxu0 0.0
        %1311 = vmatpush1.msra.mxu0 0.0
        %1312 = vmatprep.subr.mxu0 0.0
        %1313 = vmatpush1.msra.mxu0 0.0
        %1314 = vmatprep.subr.mxu0 0.0
        %1315 = vmatpush1.msra.mxu0 0.0
        %1316 = vmatprep.subr.mxu0 0.0
        %1317 = vmatpush1.msra.mxu0 0.0
        %1318 = vmatprep.subr.mxu0 0.0
        %1319 = vmatpush1.msra.mxu0 0.0
        %1320 = vmatprep.subr.mxu0 0.0
        %1321 = vmatpush1.msra.mxu0 0.0
        %1322 = vmatprep.mubr.f32.mxu0 0.0
        %1323 = vmatmul.mubr.f32.gmra.mrb[0].mxu0 %v1256
        %v1324 = vpop.f32.mrb[0].mxu0
        %v1325 = vadd.f32 0.0, %v1324
        %v1326 = vpop.f32.mrb[0].mxu0
        %1327 = vdwg.mxu0
        %s1328 = scalar_lea.vmem [#allocation2], 16
        %v1329 = vld [vmem:[%s1328] sm:$0xff]
        %v1330 = vadd.f32 %v1329, %v1249
        %v1331 = vld [vmem:[#allocation3] sm:$0xff]
        %v1332 = vadd.f32 %v1331, %v1325
        %v1333 = vxor.u32 %v1330, 2147483648
        %v1334 = vmul.f32 %v1333, 1.442695
        %v1335 = vpow.pop %v1334
        %v1336 = vadd.f32 %v1335, 1.0
        %v1337 = vrcp.pop %v1336
        %v1338 = vmul.f32 1.0, %v1337
        %v1339 = vtanh.pop %v1330
        %v1340 = vxor.u32 %v1332, 2147483648
        %v1341 = vmul.f32 %v1340, 1.442695
        %v1342 = vpow.pop %v1341
        %v1343 = vadd.f32 %v1342, 1.0
        %v1344 = vrcp.pop %v1343
        %v1345 = vmul.f32 1.0, %v1344
        %v1346 = vtanh.pop %v1332
        %v1347 = vmul.f32 %v1338, %v1133
        %1349 = vrot.lane.b32.xlu0 %v1339, 32
        %v1350 = vpop.permute.xlu0 %1349
        %v1352 = vmul.f32 %v1338, %v1350
        %1354 = vrot.lane.b32.xlu0 %v1352, 32
        %v1355 = vpop.permute.xlu0 %1354
        %v1357 = vadd.f32 %v1347, %v1355
        %v1358 = vmul.f32 %v1345, %v1162
        %1360 = vrot.lane.b32.xlu0 %v1346, 32
        %v1361 = vpop.permute.xlu0 %1360
        %v1363 = vmul.f32 %v1345, %v1361
        %1365 = vrot.lane.b32.xlu0 %v1363, 32
        %v1366 = vpop.permute.xlu0 %1365
        %v1368 = vadd.f32 %v1358, %v1366
        %v1369 = vtanh.pop %v1357
        %1371 = vrot.lane.b32.xlu0 %v1369, 32
        %v1372 = vpop.permute.xlu0 %1371
        %v1374 = vmul.f32 %v1338, %v1372
        %v1375 = vtanh.pop %v1368
        %1377 = vrot.lane.b32.xlu0 %v1375, 32
        %v1378 = vpop.permute.xlu0 %1377
        %v1380 = vmul.f32 %v1345, %v1378
        %s1381 = sadd.s32 %s933, 2
        %p1382 = scmp.ge.s32.totalorder %s1381, 1
        %s1383 = scalar_select %p1382, 1, 0
        %s1384 = scvt.s32.f32 %s1383
        %v1385 = vstv %s1384
        %v1386 = vmul.f32 %v1368, %v1385
        %v1387 = vmul.f32 %v1380, %v1385
        %1389 = vrot.lane.b32.xlu0 %v1374, 64
        %v1390 = vpop.permute.xlu0 %1389
        %s1392 = scalar_lea.vmem %s479, 16 [#allocation17]
        %1393 = vst.msk [vmem:[%s1392] sm:$0xff] %vm721, %v1390
        %1395 = vrot.lane.b32.xlu0 %v1387, 64
        %v1396 = vpop.permute.xlu0 %1395
        %1398 = vst.msk [vmem:[%s486] sm:$0xff] %vm721, %v1396
        %1399 = vst.msk [vmem:[#allocation4] sm:$0xff] %vm721, %v1390
        %1400 = vst.msk [vmem:[%s712] sm:$0xff] %vm721, %v1396
        %1402 = vrot.lane.b32.xlu0 %v1357, 96
        %v1403 = vpop.permute.xlu0 %1402
        %1405 = vst.msk [vmem:[#allocation5] sm:$0xff] %vm721, %v1403
        %1407 = vrot.lane.b32.xlu0 %v1386, 96
        %v1408 = vpop.permute.xlu0 %1407
        %1410 = vst.msk [vmem:[%s715] sm:$0xff] %vm721, %v1408
        %s1411 = sand.u32 %s241, 1
        %s1412 = scalar_lea.sflag [#allocation8], %s1411
        %s1413 = sand.u32 %s241, 1
        %s1414 = smul.addr %s1413, 24
        %s1415 = scalar_lea.vmem [#allocation17], %s1414
        %s1416 = sand.u32 %s271, 1
        %s1417 = scalar_lea.sflag [#allocation19], %s1416
        %s1418 = sand.u32 %s271, 1
        %s1419 = smul.addr %s1418, 24
        %s1420 = scalar_lea.vmem [#allocation18], %s1419
        // Predicated region
        $region81: #{tpu_custom_call.1} parent=51 // pred_check
          %p1421 = pneg %p251
        $region82: #{tpu_custom_call.1} parent=51 // pred_check_branch
          %1423 = sbr.rel (%p1421) target = $region84
        $region83: #{tpu_custom_call.1} parent=51 // pred_region
          %s1424 = smul.u32 3, %s40
          %s1426 = ssub.s32 384, 384
          %1427 = vsyncadd %s1412, %s1426
          %s1428 = sadd.s32 %s39, %s1424
          %s1429 = smul.addr %s1428, 128
          %s1430 = scalar_lea.hbm %s8, %s1429
          %s1431 = sshll.u32 %s1415, 4
          %s1432 = int_to_ptr.vmem [resolvable:$true] %s1431
          %1437 = dma.vmem_to_hbm [thread:$0]  %s1432, 384, %s1430, %s1412, 128, 128, 8
        $region84: #{tpu_custom_call.1} parent=51 // pred_fallthru
          _
        // Predicated region
        $region85: #{tpu_custom_call.1} parent=51 // pred_check
          %p1438 = pneg %p281
        $region86: #{tpu_custom_call.1} parent=51 // pred_check_branch
          %1440 = sbr.rel (%p1438) target = $region88
        $region87: #{tpu_custom_call.1} parent=51 // pred_region
          %s1441 = ssub.s32 2, %s40
          %s1442 = smul.u32 3, %s1441
          %s1444 = ssub.s32 384, 384
          %1445 = vsyncadd %s1417, %s1444
          %s1446 = sadd.s32 %s39, %s1442
          %s1447 = smul.addr %s1446, 128
          %s1448 = scalar_lea.hbm %s9, %s1447
          %s1449 = sshll.u32 %s1420, 4
          %s1450 = int_to_ptr.vmem [resolvable:$true] %s1449
          %1455 = dma.vmem_to_hbm [thread:$0]  %s1450, 384, %s1448, %s1417, 128, 128, 8
        $region88: #{tpu_custom_call.1} parent=51 // pred_fallthru
          _
      $region52: #{tpu_custom_call.1} parent=5 // pred_fallthru
        _
      %p1456 = scmp.le.s32.totalorder 2, %s30
      // Predicated region
      $region89: #{tpu_custom_call.1} parent=5 // pred_check
        %p1457 = pneg %p1456
      $region90: #{tpu_custom_call.1} parent=5 // pred_check_branch
        %1459 = sbr.rel (%p1457) target = $region92
      $region91: #{tpu_custom_call.1} parent=5 // pred_region
        %s1460 = ssub.s32 %s30, 2
        // Predicated region
        $region93: #{tpu_custom_call.1} parent=91 // pred_check
          %p1461 = pneg %p257
        $region94: #{tpu_custom_call.1} parent=91 // pred_check_branch
          %1463 = sbr.rel (%p1461) target = $region96
        $region95: #{tpu_custom_call.1} parent=91 // pred_region
          %s1464 = sand.u32 %s242, 1
          %s1465 = scalar_lea.sflag [#allocation8], %s1464
          %s1466 = sand.u32 %s242, 1
          %s1467 = smul.addr %s1466, 24
          %s1468 = scalar_lea.vmem [#allocation17], %s1467
          %1469 = dma.done %s1465, 384
        $region96: #{tpu_custom_call.1} parent=91 // pred_fallthru
          _
        // Predicated region
        $region97: #{tpu_custom_call.1} parent=91 // pred_check
          %p1470 = pneg %p287
        $region98: #{tpu_custom_call.1} parent=91 // pred_check_branch
          %1472 = sbr.rel (%p1470) target = $region100
        $region99: #{tpu_custom_call.1} parent=91 // pred_region
          %s1473 = sand.u32 %s272, 1
          %s1474 = scalar_lea.sflag [#allocation19], %s1473
          %s1475 = sand.u32 %s272, 1
          %s1476 = smul.addr %s1475, 24
          %s1477 = scalar_lea.vmem [#allocation18], %s1476
          %1478 = dma.done %s1474, 384
        $region100: #{tpu_custom_call.1} parent=91 // pred_fallthru
          _
      $region92: #{tpu_custom_call.1} parent=5 // pred_fallthru
        _
    $region6: #{tpu_custom_call.1} parent=1 // loop_footer
      %s34 = sadd.s32 1, %s30
    $region7: #{tpu_custom_call.1} parent=1 // loop_footer_branch
      %29 = sbr.rel target = $region3
    $region8: #{tpu_custom_call.1} parent=1 // loop_exit
      _
    %1479 = vsyncpa [#allocation7], 1
    %s1480 = scalar_lea.sflag [#allocation7], 1
    %1481 = vsyncpa %s1480, 1
    %1482 = vsyncpa [#allocation10], 1
    %s1483 = scalar_lea.sflag [#allocation10], 1
    %1484 = vsyncpa %s1483, 1
    %1485 = vsyncpa [#allocation13], 1
    %1486 = vsyncpa [#allocation16], 1
    %1487 = vsyncpa [#allocation8], 1
    %s1488 = scalar_lea.sflag [#allocation8], 1
    %1489 = vsyncpa %s1488, 1
    %1490 = vsyncpa [#allocation19], 1
    %s1491 = scalar_lea.sflag [#allocation19], 1
    %1492 = vsyncpa %s1491, 1

</llo_original>
